<compile_context>
chip_gen: v7x
topology: tpu7x:2x2x1
jax: 0.10.0
libtpu: 0.0.40
codegen_flags: <defaults>
</compile_context>

<pallas_src>
from functools import partial

import jax
import jax.numpy as jnp
from jax.experimental import pallas as pl
from jax.experimental.pallas import tpu as pltpu


def _linear_attention_kernel(x_ref, wqkv_ref, swout_ref, mask_ref,
                             gmat_ref, gtmat_ref, gamma_ref, beta_ref,
                             o_ref, *, heads, dim_head, eps):
    hidden = heads * dim_head
    N = x_ref.shape[2]

    x = x_ref[0].astype(jnp.float32)                                    # (C, N)

    # to_qkv: 1x1 conv (no bias) == channel matmul.
    qkv = jnp.dot(wqkv_ref[...], x,
                  preferred_element_type=jnp.float32)                   # (3*hidden, N)
    q = qkv[:hidden]
    k = qkv[hidden:2 * hidden]
    v = qkv[2 * hidden:]

    # q: softmax over the per-head channel axis (segments of dim_head sublanes).
    q3 = q.reshape(heads, dim_head, N)
    qe = jnp.exp(q3 - jnp.max(q3, axis=1, keepdims=True))
    q = (qe / jnp.sum(qe, axis=1, keepdims=True)).reshape(hidden, N)
    # (the 1/sqrt(dim_head) scale is folded into swout_ref)

    # k: softmax over the sequence axis (dim=-1).
    ke = jnp.exp(k - jnp.max(k, axis=1, keepdims=True))
    k = ke / jnp.sum(ke, axis=1, keepdims=True)

    # All-head context in one 128-wide matmul; the 0/1 block-diagonal mask
    # zeroes cross-head terms.  ctx[d, e] = sum_n k[d, n] * v[e, n]
    ctx = jax.lax.dot_general(k, v, (((1,), (1,)), ((), ())),
                              preferred_element_type=jnp.float32)        # (hidden, hidden)
    ctx = ctx * mask_ref[...]

    # wout-fold: m[o, d] = sum_e (scale*wout)[o, e] * ctx[d, e]  -> (dim, hidden)
    m = jax.lax.dot_general(swout_ref[...], ctx, (((1,), (1,)), ((), ())),
                            preferred_element_type=jnp.float32)          # (dim, hidden)
    # y[o, n] = sum_d m[o, d] * q[d, n]  (replaces ctx^T@q followed by wout@out)
    y = jnp.dot(m, q, preferred_element_type=jnp.float32)                # (dim, N)

    # to_out[1]: nn.LayerNorm(dim) on NCHW => normalize each contiguous group
    # of W elements along N (requires W == dim).  Two-pass stats via the small
    # group matrices G (1/W folded in) and GT (broadcast back).  Bias of the
    # 1x1 conv is constant along this axis and cancels here.
    mean = jnp.dot(jnp.dot(y, gmat_ref[...],
                           preferred_element_type=jnp.float32),
                   gtmat_ref[...], preferred_element_type=jnp.float32)   # (dim, N)
    d0 = y - mean
    var = jnp.dot(jnp.dot(d0 * d0, gmat_ref[...],
                          preferred_element_type=jnp.float32),
                  gtmat_ref[...], preferred_element_type=jnp.float32)    # (dim, N)
    yn = d0 * jax.lax.rsqrt(var + eps)

    o_ref[0] = (yn * gamma_ref[...] + beta_ref[...]).astype(o_ref.dtype)


def linear_attention_pallas(x, wqkv, wout, bout, ln_w, ln_b,
                            *, heads=4, dim_head=32, eps=1e-5):
    B, C, H, W = x.shape
    N = H * W
    hidden = heads * dim_head
    dim = C
    assert W == dim, "nn.LayerNorm(dim) on an NCHW tensor requires W == dim"
    assert wqkv.shape == (3 * hidden, C) and wout.shape == (dim, hidden)

    f32 = jnp.float32
    in_dtype = x.dtype
    x_flat = x.reshape(B, C, N)                 # DMA in the model dtype
    wqkv_f = wqkv.astype(f32)
    scale = dim_head ** (-0.5)
    swout = wout.astype(f32) * scale            # attention scale folded into to_out weight
    # bout is mathematically cancelled by the LayerNorm mean subtraction
    # (constant along the normalized axis) so it never enters the kernel.
    del bout

    head_id = jnp.arange(hidden) // dim_head
    mask = (head_id[:, None] == head_id[None, :]).astype(f32)            # (hidden, hidden) 0/1

    grp = jnp.arange(N) // W
    G = (grp[:, None] == jnp.arange(H)[None, :]).astype(f32) / W         # (N, H), 1/W folded
    GT = (grp[None, :] == jnp.arange(H)[:, None]).astype(f32)            # (H, N)

    # gamma/beta indexed by width position (n % W); tiled across the H groups.
    gamma = jnp.tile(ln_w.astype(f32), (H,)).reshape(1, N)
    beta = jnp.tile(ln_b.astype(f32), (H,)).reshape(1, N)

    kernel = partial(_linear_attention_kernel, heads=heads,
                     dim_head=dim_head, eps=eps)

    # Advisory cost estimate so XLA schedules/overlaps the custom call sanely.
    flops_per_b = (2 * (3 * hidden) * C * N        # qkv projection
                   + 2 * hidden * hidden * N       # ctx
                   + 2 * dim * hidden * hidden     # wout-fold (tiny)
                   + 2 * dim * hidden * N          # y = m @ q
                   + 2 * dim * N * H * 4)          # LN group stats + broadcast
    resident_bytes = int(wqkv_f.size + swout.size + mask.size
                         + G.size + GT.size + gamma.size + beta.size) * 4
    io_bytes = B * (C + dim) * N * jnp.dtype(in_dtype).itemsize
    cost = pl.CostEstimate(flops=B * flops_per_b,
                           transcendentals=B * 2 * hidden * N,
                           bytes_accessed=io_bytes + resident_bytes)

    # VMEM budget: resident constants + double-buffered x/out tiles + f32
    # intermediates with 2x headroom, clamped to the device's physical VMEM
    # (v7x only has 64 MiB) with safety margin.
    per_step_bytes = (2 * C * N * jnp.dtype(in_dtype).itemsize
                      + 2 * dim * N * jnp.dtype(in_dtype).itemsize
                      + (3 * hidden + 2 * hidden + 6 * dim) * N * 4)
    try:
        vmem_cap = int(pltpu.get_tpu_info().vmem_capacity_bytes)
    except Exception:
        vmem_cap = 64 * 1024 * 1024   # conservative: smallest across v5e/v6e/v7x
    vmem_budget = max(32 * 1024 * 1024, 2 * (resident_bytes + per_step_bytes))
    vmem_budget = int(min(vmem_budget, vmem_cap - 12 * 1024 * 1024))

    out = pl.pallas_call(
        kernel,
        out_shape=jax.ShapeDtypeStruct((B, dim, N), in_dtype),
        grid=(B,),
        in_specs=[
            pl.BlockSpec((1, C, N), lambda b: (b, 0, 0)),
            pl.BlockSpec((3 * hidden, C), lambda b: (0, 0)),
            pl.BlockSpec((dim, hidden), lambda b: (0, 0)),
            pl.BlockSpec((hidden, hidden), lambda b: (0, 0)),
            pl.BlockSpec((N, H), lambda b: (0, 0)),
            pl.BlockSpec((H, N), lambda b: (0, 0)),
            pl.BlockSpec((1, N), lambda b: (0, 0)),
            pl.BlockSpec((1, N), lambda b: (0, 0)),
        ],
        out_specs=pl.BlockSpec((1, dim, N), lambda b: (b, 0, 0)),
        compiler_params=pltpu.CompilerParams(
            dimension_semantics=("parallel",),
            vmem_limit_bytes=vmem_budget),
        cost_estimate=cost,
    )(x_flat, wqkv_f, swout, mask, G, GT, gamma, beta)

    return out.reshape(B, dim, H, W)


def linear_attention_ref(x, wqkv, wout, bout, ln_w, ln_b,
                         *, heads=4, dim_head=32, eps=1e-5):
    """Pure-JAX reference mirroring the PyTorch forward exactly (keeps bout)."""
    B, C, H, W = x.shape
    N = H * W
    hidden = heads * dim_head
    scale = dim_head ** (-0.5)

    xf = x.reshape(B, C, N)
    qkv = jnp.einsum('oc,bcn->bon', wqkv, xf)
    q, k, v = jnp.split(qkv, 3, axis=1)
    reh = lambda t: t.reshape(B, heads, dim_head, N)
    q, k, v = map(reh, (q, k, v))
    q = jax.nn.softmax(q, axis=-2) * scale
    k = jax.nn.softmax(k, axis=-1)
    ctx = jnp.einsum('bhdn,bhen->bhde', k, v)
    out = jnp.einsum('bhde,bhdn->bhen', ctx, q)
    out = out.reshape(B, hidden, N)
    y = jnp.einsum('oc,bcn->bon', wout, out) + bout.reshape(1, -1, 1)
    y = y.reshape(B, C, H, W)
    mu = y.mean(-1, keepdims=True)
    var = ((y - mu) ** 2).mean(-1, keepdims=True)
    yn = (y - mu) / jnp.sqrt(var + eps)
    return yn * ln_w.reshape(1, 1, 1, -1) + ln_b.reshape(1, 1, 1, -1)


if __name__ == "__main__":
    B, dim, heads, dim_head = 2, 16, 4, 32
    hidden = heads * dim_head
    H, W = 8, dim  # W must equal dim for the module's LayerNorm to be well-formed

    key = jax.random.PRNGKey(0)
    k0, k1, k2, k3, k4, k5 = jax.random.split(key, 6)
    x = jax.random.normal(k0, (B, dim, H, W), dtype=jnp.float32)
    wqkv = jax.random.normal(k1, (3 * hidden, dim), dtype=jnp.float32) * 0.05
    wout = jax.random.normal(k2, (dim, hidden), dtype=jnp.float32) * 0.05
    bout = jax.random.normal(k3, (dim,), dtype=jnp.float32) * 0.05
    ln_w = 1.0 + 0.1 * jax.random.normal(k4, (dim,), dtype=jnp.float32)
    ln_b = 0.1 * jax.random.normal(k5, (dim,), dtype=jnp.float32)

    out = linear_attention_pallas(x, wqkv, wout, bout, ln_w, ln_b,
                                  heads=heads, dim_head=dim_head)
    out = jax.block_until_ready(out)

    ref = linear_attention_ref(x, wqkv, wout, bout, ln_w, ln_b,
                               heads=heads, dim_head=dim_head)
    assert out.shape == (B, dim, H, W)
    # All kernel math is f32 with exact divides; only matmul association order
    # differs from the reference, so the error is ~1e-5.
    assert jnp.allclose(out, ref, atol=1e-3, rtol=1e-3), \
        f"max err {jnp.max(jnp.abs(out - ref))}"
    print("KERNEL_OK")
</pallas_src>

<mosaic_0001>
module attributes {stable_mosaic.version = 11 : i64} {
  func.func @_linear_attention_kernel(%arg0: i32, %arg1: memref<1x16x128xf32, #tpu.memory_space<vmem>>, %arg2: memref<384x16xf32, #tpu.memory_space<vmem>>, %arg3: memref<16x128xf32, #tpu.memory_space<vmem>>, %arg4: memref<128x128xf32, #tpu.memory_space<vmem>>, %arg5: memref<128x8xf32, #tpu.memory_space<vmem>>, %arg6: memref<8x128xf32, #tpu.memory_space<vmem>>, %arg7: memref<1x128xf32, #tpu.memory_space<vmem>>, %arg8: memref<1x128xf32, #tpu.memory_space<vmem>>, %arg9: memref<1x16x128xf32, #tpu.memory_space<vmem>>) attributes {dimension_semantics = [#tpu.dimension_semantics<parallel>], iteration_bounds = array<i64: 2>, scalar_prefetch = 0 : i64, scratch_operands = 0 : i64, tpu.core_type = #tpu.core_type<tc>, window_params = [{transform_indices = @transform_0, window_bounds = array<i64: 1, 16, 128>}, {pipeline_mode = #tpu.pipeline_mode<synchronous>, transform_indices = @transform_1, window_bounds = array<i64: 384, 16>}, {pipeline_mode = #tpu.pipeline_mode<synchronous>, transform_indices = @transform_2, window_bounds = array<i64: 16, 128>}, {pipeline_mode = #tpu.pipeline_mode<synchronous>, transform_indices = @transform_3, window_bounds = array<i64: 128, 128>}, {pipeline_mode = #tpu.pipeline_mode<synchronous>, transform_indices = @transform_4, window_bounds = array<i64: 128, 8>}, {pipeline_mode = #tpu.pipeline_mode<synchronous>, transform_indices = @transform_5, window_bounds = array<i64: 8, 128>}, {pipeline_mode = #tpu.pipeline_mode<synchronous>, transform_indices = @transform_6, window_bounds = array<i64: 1, 128>}, {pipeline_mode = #tpu.pipeline_mode<synchronous>, transform_indices = @transform_7, window_bounds = array<i64: 1, 128>}, {transform_indices = @transform_8, window_bounds = array<i64: 1, 16, 128>}]} {
    %c0 = arith.constant 0 : index
    %c0_0 = arith.constant 0 : index
    %c0_1 = arith.constant 0 : index
    %0 = vector.load %arg1[%c0, %c0_0, %c0_1] : memref<1x16x128xf32, #tpu.memory_space<vmem>>, vector<1x16x128xf32>
    %1 = vector.shape_cast %0 : vector<1x16x128xf32> to vector<16x128xf32>
    %c0_2 = arith.constant 0 : index
    %c0_3 = arith.constant 0 : index
    %2 = vector.load %arg2[%c0_2, %c0_3] : memref<384x16xf32, #tpu.memory_space<vmem>>, vector<384x16xf32>
    %cst = arith.constant dense<0.000000e+00> : vector<384x128xf32>
    %3 = tpu.matmul %2, %1, %cst {dimension_numbers = #tpu.dot_dimension_numbers<[1], [0], [0], [1], [0, 0, 1, 1], [], []>} : vector<384x16xf32>, vector<16x128xf32>, vector<384x128xf32> -> vector<384x128xf32>
    %4 = vector.extract_strided_slice %3 {offsets = [0, 0], sizes = [128, 128], strides = [1, 1]} : vector<384x128xf32> to vector<128x128xf32>
    %5 = vector.extract_strided_slice %3 {offsets = [128, 0], sizes = [128, 128], strides = [1, 1]} : vector<384x128xf32> to vector<128x128xf32>
    %6 = vector.extract_strided_slice %3 {offsets = [256, 0], sizes = [128, 128], strides = [1, 1]} : vector<384x128xf32> to vector<128x128xf32>
    %7 = vector.shape_cast %4 : vector<128x128xf32> to vector<4x32x128xf32>
    %cst_4 = arith.constant dense<0xFF800000> : vector<4x128xf32>
    %8 = vector.multi_reduction <maximumf>, %7, %cst_4 [1] : vector<4x32x128xf32> to vector<4x128xf32>
    %9 = vector.shape_cast %8 : vector<4x128xf32> to vector<4x1x128xf32>
    %10 = vector.broadcast %9 : vector<4x1x128xf32> to vector<4x32x128xf32>
    %11 = arith.subf %7, %10 : vector<4x32x128xf32>
    %12 = math.exp %11 : vector<4x32x128xf32>
    %cst_5 = arith.constant dense<0.000000e+00> : vector<4x128xf32>
    %13 = vector.multi_reduction <add>, %12, %cst_5 [1] : vector<4x32x128xf32> to vector<4x128xf32>
    %14 = vector.shape_cast %13 : vector<4x128xf32> to vector<4x1x128xf32>
    %15 = vector.broadcast %14 : vector<4x1x128xf32> to vector<4x32x128xf32>
    %16 = arith.divf %12, %15 : vector<4x32x128xf32>
    %17 = vector.shape_cast %16 : vector<4x32x128xf32> to vector<128x128xf32>
    %cst_6 = arith.constant dense<0xFF800000> : vector<128xf32>
    %18 = vector.multi_reduction <maximumf>, %5, %cst_6 [1] : vector<128x128xf32> to vector<128xf32>
    %19 = vector.shape_cast %18 : vector<128xf32> to vector<128x1xf32>
    %20 = vector.broadcast %19 : vector<128x1xf32> to vector<128x128xf32>
    %21 = arith.subf %5, %20 : vector<128x128xf32>
    %22 = math.exp %21 : vector<128x128xf32>
    %cst_7 = arith.constant dense<0.000000e+00> : vector<128xf32>
    %23 = vector.multi_reduction <add>, %22, %cst_7 [1] : vector<128x128xf32> to vector<128xf32>
    %24 = vector.shape_cast %23 : vector<128xf32> to vector<128x1xf32>
    %25 = vector.broadcast %24 : vector<128x1xf32> to vector<128x128xf32>
    %26 = arith.divf %22, %25 : vector<128x128xf32>
    %cst_8 = arith.constant dense<0.000000e+00> : vector<128x128xf32>
    %27 = tpu.matmul %26, %6, %cst_8 {dimension_numbers = #tpu.dot_dimension_numbers<[1], [1], [0], [0], [0, 0, 1, 0], [], []>} : vector<128x128xf32>, vector<128x128xf32>, vector<128x128xf32> -> vector<128x128xf32>
    %c0_9 = arith.constant 0 : index
    %c0_10 = arith.constant 0 : index
    %28 = vector.load %arg4[%c0_9, %c0_10] : memref<128x128xf32, #tpu.memory_space<vmem>>, vector<128x128xf32>
    %29 = arith.mulf %27, %28 : vector<128x128xf32>
    %c0_11 = arith.constant 0 : index
    %c0_12 = arith.constant 0 : index
    %30 = vector.load %arg3[%c0_11, %c0_12] : memref<16x128xf32, #tpu.memory_space<vmem>>, vector<16x128xf32>
    %cst_13 = arith.constant dense<0.000000e+00> : vector<16x128xf32>
    %31 = tpu.matmul %30, %29, %cst_13 {dimension_numbers = #tpu.dot_dimension_numbers<[1], [1], [0], [0], [0, 0, 1, 0], [], []>} : vector<16x128xf32>, vector<128x128xf32>, vector<16x128xf32> -> vector<16x128xf32>
    %cst_14 = arith.constant dense<0.000000e+00> : vector<16x128xf32>
    %32 = tpu.matmul %31, %17, %cst_14 {dimension_numbers = #tpu.dot_dimension_numbers<[1], [0], [0], [1], [0, 0, 1, 1], [], []>} : vector<16x128xf32>, vector<128x128xf32>, vector<16x128xf32> -> vector<16x128xf32>
    %c0_15 = arith.constant 0 : index
    %c0_16 = arith.constant 0 : index
    %33 = vector.load %arg5[%c0_15, %c0_16] : memref<128x8xf32, #tpu.memory_space<vmem>>, vector<128x8xf32>
    %cst_17 = arith.constant dense<0.000000e+00> : vector<16x8xf32>
    %34 = tpu.matmul %32, %33, %cst_17 {dimension_numbers = #tpu.dot_dimension_numbers<[1], [0], [0], [1], [0, 0, 1, 1], [], []>} : vector<16x128xf32>, vector<128x8xf32>, vector<16x8xf32> -> vector<16x8xf32>
    %c0_18 = arith.constant 0 : index
    %c0_19 = arith.constant 0 : index
    %35 = vector.load %arg6[%c0_18, %c0_19] : memref<8x128xf32, #tpu.memory_space<vmem>>, vector<8x128xf32>
    %cst_20 = arith.constant dense<0.000000e+00> : vector<16x128xf32>
    %36 = tpu.matmul %34, %35, %cst_20 {dimension_numbers = #tpu.dot_dimension_numbers<[1], [0], [0], [1], [0, 0, 1, 1], [], []>} : vector<16x8xf32>, vector<8x128xf32>, vector<16x128xf32> -> vector<16x128xf32>
    %37 = arith.subf %32, %36 : vector<16x128xf32>
    %38 = arith.mulf %37, %37 : vector<16x128xf32>
    %c0_21 = arith.constant 0 : index
    %c0_22 = arith.constant 0 : index
    %39 = vector.load %arg5[%c0_21, %c0_22] : memref<128x8xf32, #tpu.memory_space<vmem>>, vector<128x8xf32>
    %cst_23 = arith.constant dense<0.000000e+00> : vector<16x8xf32>
    %40 = tpu.matmul %38, %39, %cst_23 {dimension_numbers = #tpu.dot_dimension_numbers<[1], [0], [0], [1], [0, 0, 1, 1], [], []>} : vector<16x128xf32>, vector<128x8xf32>, vector<16x8xf32> -> vector<16x8xf32>
    %c0_24 = arith.constant 0 : index
    %c0_25 = arith.constant 0 : index
    %41 = vector.load %arg6[%c0_24, %c0_25] : memref<8x128xf32, #tpu.memory_space<vmem>>, vector<8x128xf32>
    %cst_26 = arith.constant dense<0.000000e+00> : vector<16x128xf32>
    %42 = tpu.matmul %40, %41, %cst_26 {dimension_numbers = #tpu.dot_dimension_numbers<[1], [0], [0], [1], [0, 0, 1, 1], [], []>} : vector<16x8xf32>, vector<8x128xf32>, vector<16x128xf32> -> vector<16x128xf32>
    %cst_27 = arith.constant 9.99999974E-6 : f32
    %43 = vector.broadcast %cst_27 : f32 to vector<16x128xf32>
    %44 = arith.addf %42, %43 : vector<16x128xf32>
    %45 = math.rsqrt %44 : vector<16x128xf32>
    %46 = arith.mulf %37, %45 : vector<16x128xf32>
    %c0_28 = arith.constant 0 : index
    %c0_29 = arith.constant 0 : index
    %47 = vector.load %arg7[%c0_28, %c0_29] : memref<1x128xf32, #tpu.memory_space<vmem>>, vector<1x128xf32>
    %48 = vector.broadcast %47 : vector<1x128xf32> to vector<16x128xf32>
    %49 = arith.mulf %46, %48 : vector<16x128xf32>
    %c0_30 = arith.constant 0 : index
    %c0_31 = arith.constant 0 : index
    %50 = vector.load %arg8[%c0_30, %c0_31] : memref<1x128xf32, #tpu.memory_space<vmem>>, vector<1x128xf32>
    %51 = vector.broadcast %50 : vector<1x128xf32> to vector<16x128xf32>
    %52 = arith.addf %49, %51 : vector<16x128xf32>
    %c0_32 = arith.constant 0 : index
    %c0_33 = arith.constant 0 : index
    %c0_34 = arith.constant 0 : index
    %53 = vector.load %arg9[%c0_32, %c0_33, %c0_34] : memref<1x16x128xf32, #tpu.memory_space<vmem>>, vector<1x16x128xf32>
    %54 = vector.shape_cast %53 : vector<1x16x128xf32> to vector<16x128xf32>
    %55 = vector.shape_cast %52 : vector<16x128xf32> to vector<1x16x128xf32>
    tpu.vector_store %arg9[%c0_32, %c0_33, %c0_34], %55 {strides = array<i32>} : memref<1x16x128xf32, #tpu.memory_space<vmem>>, vector<1x16x128xf32>,
    return
  }
  func.func @transform_0(%arg0: i32) -> (i32, i32, i32) {
    %c0_i32 = arith.constant 0 : i32
    %c0_i32_0 = arith.constant 0 : i32
    %c0_i32_1 = arith.constant 0 : i32
    return %arg0, %c0_i32, %c0_i32_0 : i32, i32, i32
  }
  func.func @transform_1(%arg0: i32) -> (i32, i32) {
    %c0_i32 = arith.constant 0 : i32
    %c0_i32_0 = arith.constant 0 : i32
    %c0_i32_1 = arith.constant 0 : i32
    return %c0_i32, %c0_i32_0 : i32, i32
  }
  func.func @transform_2(%arg0: i32) -> (i32, i32) {
    %c0_i32 = arith.constant 0 : i32
    %c0_i32_0 = arith.constant 0 : i32
    %c0_i32_1 = arith.constant 0 : i32
    return %c0_i32, %c0_i32_0 : i32, i32
  }
  func.func @transform_3(%arg0: i32) -> (i32, i32) {
    %c0_i32 = arith.constant 0 : i32
    %c0_i32_0 = arith.constant 0 : i32
    %c0_i32_1 = arith.constant 0 : i32
    return %c0_i32, %c0_i32_0 : i32, i32
  }
  func.func @transform_4(%arg0: i32) -> (i32, i32) {
    %c0_i32 = arith.constant 0 : i32
    %c0_i32_0 = arith.constant 0 : i32
    %c0_i32_1 = arith.constant 0 : i32
    return %c0_i32, %c0_i32_0 : i32, i32
  }
  func.func @transform_5(%arg0: i32) -> (i32, i32) {
    %c0_i32 = arith.constant 0 : i32
    %c0_i32_0 = arith.constant 0 : i32
    %c0_i32_1 = arith.constant 0 : i32
    return %c0_i32, %c0_i32_0 : i32, i32
  }
  func.func @transform_6(%arg0: i32) -> (i32, i32) {
    %c0_i32 = arith.constant 0 : i32
    %c0_i32_0 = arith.constant 0 : i32
    %c0_i32_1 = arith.constant 0 : i32
    return %c0_i32, %c0_i32_0 : i32, i32
  }
  func.func @transform_7(%arg0: i32) -> (i32, i32) {
    %c0_i32 = arith.constant 0 : i32
    %c0_i32_0 = arith.constant 0 : i32
    %c0_i32_1 = arith.constant 0 : i32
    return %c0_i32, %c0_i32_0 : i32, i32
  }
  func.func @transform_8(%arg0: i32) -> (i32, i32, i32) {
    %c0_i32 = arith.constant 0 : i32
    %c0_i32_0 = arith.constant 0 : i32
    %c0_i32_1 = arith.constant 0 : i32
    return %arg0, %c0_i32, %c0_i32_0 : i32, i32, i32
  }
}

</mosaic_0001>

<llo_original>
// kernel: tpu_custom_call.1
$region0: #{tpu_custom_call.1}
  #allocation0 [shape = 'u32[]', space=smem, size = 0x4, offset = 0x4, fixed_abs, tag = 'smem constant byte address 0x4 - core index']
  #allocation1 [shape = 'u32[144,128]{1,0:T(1,128)}', space=vmem, size = 0x12000, scoped, tag = 'internal scratch']
  %s0 = inlined_call_operand.vmem [shape: f32[2,16,128], index: 0, kind: input, shape index: {}]
  %s1 = inlined_call_operand.vmem [shape: f32[384,16], index: 1, kind: input, shape index: {}]
  %s2 = inlined_call_operand.vmem [shape: f32[16,128], index: 2, kind: input, shape index: {}]
  %s3 = inlined_call_operand.vmem [shape: f32[128,128], index: 3, kind: input, shape index: {}]
  %s4 = inlined_call_operand.vmem [shape: f32[128,8], index: 4, kind: input, shape index: {}]
  %s5 = inlined_call_operand.vmem [shape: f32[8,128], index: 5, kind: input, shape index: {}]
  %s6 = inlined_call_operand.vmem [shape: f32[1,128], index: 6, kind: input, shape index: {}]
  %s7 = inlined_call_operand.vmem [shape: f32[1,128], index: 7, kind: input, shape index: {}]
  %s8 = inlined_call_operand.hbm [shape: f32[2,16,128], index: 8, kind: output, shape index: {}]
  %s9 = sld [smem:[#allocation0]]
  $region65: #{tpu_custom_call.1} parent=0
    _
  %s11 = ssub.s32 1, %s9
  %s12 = scalar_select 0, %s11, %s9
  $region1: #{tpu_custom_call.1} parent=0
    #allocation2 [shape = 'u8[16384]{0}', space=vmem, size = 0x4000, scoped, tag = 'output window, operand 0']
    #allocation3 [shape = 's32[2]{0}', space=sflag, size = 0x8, scoped, tag = 'scoped memory for tpu_custom_call.1']
    %13 = vsyncpa [#allocation3], 0
    %s14 = scalar_lea.sflag [#allocation3], 1
    %15 = vsyncpa %s14, 0
    loop: start=0, step=1, limit=4
    $region2: #{tpu_custom_call.1} parent=1 // loop_pre_header
      _
    $region3: #{tpu_custom_call.1} parent=1 // loop_header
      %s17 = sphi 0, %s21
      %p18 = scmp.ge.s32.totalorder %s17, 4
      %s27 = sphi 0, %s29
      %s30 = sphi 0, %s27
      %s31 = sphi 0, %s30
      %s47 = sphi 0, %s31
      %s51 = sphi 0, %s51
      %s53 = sphi 0, %s51
      %s54 = sphi 0, %s53
      %s68 = sphi 0, %s54
      %s72 = sphi 0, %s72
      %s74 = sphi 0, %s72
      %s75 = sphi 0, %s74
      %s89 = sphi 0, %s75
      %s93 = sphi 0, %s93
      %s95 = sphi 0, %s93
      %s96 = sphi 0, %s95
      %s110 = sphi 0, %s96
      %s114 = sphi 0, %s114
      %s116 = sphi 0, %s114
      %s117 = sphi 0, %s116
      %s131 = sphi 0, %s117
      %s135 = sphi 0, %s135
      %s137 = sphi 0, %s135
      %s138 = sphi 0, %s137
      %s152 = sphi 0, %s138
      %s156 = sphi 0, %s156
      %s158 = sphi 0, %s156
      %s159 = sphi 0, %s158
      %s173 = sphi 0, %s159
      %s177 = sphi 0, %s177
      %s179 = sphi 0, %s177
      %s180 = sphi 0, %s179
      %s194 = sphi 0, %s180
      %s200 = sphi 0, %s202
      %s203 = sphi 0, %s200
      %s204 = sphi 0, %s203
      %s220 = sphi 0, %s204
    $region4: #{tpu_custom_call.1} parent=1 // loop_header_branch
      %20 = sbr.rel (%p18) target = $region8
    $region5: #{tpu_custom_call.1} parent=1 // loop_body
      %s22 = ssub.s32 %s17, 1
      %s23 = ssub.s32 %s17, 2
      %s24 = sadd.s32 %s17, 1
      %s25 = ssub.s32 %s17, %s24
      %p26 = scmp.eq.s32.totalorder %s25, 0
      %s28 = sadd.s32 %s27, 1
      %s29 = scalar_select %p26, %s27, %s28
      %p32 = pneg %p26
      %p33 = scmp.eq.s32.totalorder %s17, 1
      %p34 = por %p32, %p33
      %p35 = scmp.ne.s32.totalorder %s27, %s30
      %p36 = scmp.eq.s32.totalorder %s17, 0
      %p37 = por %p35, %p36
      %p38 = scmp.ne.s32.totalorder %s27, %s30
      %p39 = scmp.eq.s32.totalorder %s22, 1
      %p40 = por %p38, %p39
      %p41 = scmp.ne.s32.totalorder %s30, %s31
      %p42 = scmp.eq.s32.totalorder %s22, 0
      %p43 = por %p41, %p42
      %p44 = scmp.ne.s32.totalorder %s30, %s31
      %p45 = scmp.eq.s32.totalorder %s23, 1
      %p46 = por %p44, %p45
      %p48 = scmp.ne.s32.totalorder %s31, %s47
      %p49 = scmp.eq.s32.totalorder %s23, 0
      %p50 = por %p48, %p49
      %s52 = sadd.s32 %s51, 1
      %p55 = scmp.eq.s32.totalorder %s17, 1
      %p56 = scmp.ne.s32.totalorder %s51, %s53
      %p57 = scmp.eq.s32.totalorder %s17, 0
      %p58 = por %p56, %p57
      %p59 = scmp.ne.s32.totalorder %s51, %s53
      %p60 = scmp.eq.s32.totalorder %s22, 1
      %p61 = por %p59, %p60
      %p62 = scmp.ne.s32.totalorder %s53, %s54
      %p63 = scmp.eq.s32.totalorder %s22, 0
      %p64 = por %p62, %p63
      %p65 = scmp.ne.s32.totalorder %s53, %s54
      %p66 = scmp.eq.s32.totalorder %s23, 1
      %p67 = por %p65, %p66
      %p69 = scmp.ne.s32.totalorder %s54, %s68
      %p70 = scmp.eq.s32.totalorder %s23, 0
      %p71 = por %p69, %p70
      %s73 = sadd.s32 %s72, 1
      %p76 = scmp.eq.s32.totalorder %s17, 1
      %p77 = scmp.ne.s32.totalorder %s72, %s74
      %p78 = scmp.eq.s32.totalorder %s17, 0
      %p79 = por %p77, %p78
      %p80 = scmp.ne.s32.totalorder %s72, %s74
      %p81 = scmp.eq.s32.totalorder %s22, 1
      %p82 = por %p80, %p81
      %p83 = scmp.ne.s32.totalorder %s74, %s75
      %p84 = scmp.eq.s32.totalorder %s22, 0
      %p85 = por %p83, %p84
      %p86 = scmp.ne.s32.totalorder %s74, %s75
      %p87 = scmp.eq.s32.totalorder %s23, 1
      %p88 = por %p86, %p87
      %p90 = scmp.ne.s32.totalorder %s75, %s89
      %p91 = scmp.eq.s32.totalorder %s23, 0
      %p92 = por %p90, %p91
      %s94 = sadd.s32 %s93, 1
      %p97 = scmp.eq.s32.totalorder %s17, 1
      %p98 = scmp.ne.s32.totalorder %s93, %s95
      %p99 = scmp.eq.s32.totalorder %s17, 0
      %p100 = por %p98, %p99
      %p101 = scmp.ne.s32.totalorder %s93, %s95
      %p102 = scmp.eq.s32.totalorder %s22, 1
      %p103 = por %p101, %p102
      %p104 = scmp.ne.s32.totalorder %s95, %s96
      %p105 = scmp.eq.s32.totalorder %s22, 0
      %p106 = por %p104, %p105
      %p107 = scmp.ne.s32.totalorder %s95, %s96
      %p108 = scmp.eq.s32.totalorder %s23, 1
      %p109 = por %p107, %p108
      %p111 = scmp.ne.s32.totalorder %s96, %s110
      %p112 = scmp.eq.s32.totalorder %s23, 0
      %p113 = por %p111, %p112
      %s115 = sadd.s32 %s114, 1
      %p118 = scmp.eq.s32.totalorder %s17, 1
      %p119 = scmp.ne.s32.totalorder %s114, %s116
      %p120 = scmp.eq.s32.totalorder %s17, 0
      %p121 = por %p119, %p120
      %p122 = scmp.ne.s32.totalorder %s114, %s116
      %p123 = scmp.eq.s32.totalorder %s22, 1
      %p124 = por %p122, %p123
      %p125 = scmp.ne.s32.totalorder %s116, %s117
      %p126 = scmp.eq.s32.totalorder %s22, 0
      %p127 = por %p125, %p126
      %p128 = scmp.ne.s32.totalorder %s116, %s117
      %p129 = scmp.eq.s32.totalorder %s23, 1
      %p130 = por %p128, %p129
      %p132 = scmp.ne.s32.totalorder %s117, %s131
      %p133 = scmp.eq.s32.totalorder %s23, 0
      %p134 = por %p132, %p133
      %s136 = sadd.s32 %s135, 1
      %p139 = scmp.eq.s32.totalorder %s17, 1
      %p140 = scmp.ne.s32.totalorder %s135, %s137
      %p141 = scmp.eq.s32.totalorder %s17, 0
      %p142 = por %p140, %p141
      %p143 = scmp.ne.s32.totalorder %s135, %s137
      %p144 = scmp.eq.s32.totalorder %s22, 1
      %p145 = por %p143, %p144
      %p146 = scmp.ne.s32.totalorder %s137, %s138
      %p147 = scmp.eq.s32.totalorder %s22, 0
      %p148 = por %p146, %p147
      %p149 = scmp.ne.s32.totalorder %s137, %s138
      %p150 = scmp.eq.s32.totalorder %s23, 1
      %p151 = por %p149, %p150
      %p153 = scmp.ne.s32.totalorder %s138, %s152
      %p154 = scmp.eq.s32.totalorder %s23, 0
      %p155 = por %p153, %p154
      %s157 = sadd.s32 %s156, 1
      %p160 = scmp.eq.s32.totalorder %s17, 1
      %p161 = scmp.ne.s32.totalorder %s156, %s158
      %p162 = scmp.eq.s32.totalorder %s17, 0
      %p163 = por %p161, %p162
      %p164 = scmp.ne.s32.totalorder %s156, %s158
      %p165 = scmp.eq.s32.totalorder %s22, 1
      %p166 = por %p164, %p165
      %p167 = scmp.ne.s32.totalorder %s158, %s159
      %p168 = scmp.eq.s32.totalorder %s22, 0
      %p169 = por %p167, %p168
      %p170 = scmp.ne.s32.totalorder %s158, %s159
      %p171 = scmp.eq.s32.totalorder %s23, 1
      %p172 = por %p170, %p171
      %p174 = scmp.ne.s32.totalorder %s159, %s173
      %p175 = scmp.eq.s32.totalorder %s23, 0
      %p176 = por %p174, %p175
      %s178 = sadd.s32 %s177, 1
      %p181 = scmp.eq.s32.totalorder %s17, 1
      %p182 = scmp.ne.s32.totalorder %s177, %s179
      %p183 = scmp.eq.s32.totalorder %s17, 0
      %p184 = por %p182, %p183
      %p185 = scmp.ne.s32.totalorder %s177, %s179
      %p186 = scmp.eq.s32.totalorder %s22, 1
      %p187 = por %p185, %p186
      %p188 = scmp.ne.s32.totalorder %s179, %s180
      %p189 = scmp.eq.s32.totalorder %s22, 0
      %p190 = por %p188, %p189
      %p191 = scmp.ne.s32.totalorder %s179, %s180
      %p192 = scmp.eq.s32.totalorder %s23, 1
      %p193 = por %p191, %p192
      %p195 = scmp.ne.s32.totalorder %s180, %s194
      %p196 = scmp.eq.s32.totalorder %s23, 0
      %p197 = por %p195, %p196
      %s198 = ssub.s32 %s17, %s24
      %p199 = scmp.eq.s32.totalorder %s198, 0
      %s201 = sadd.s32 %s200, 1
      %s202 = scalar_select %p199, %s200, %s201
      %p205 = pneg %p199
      %p206 = scmp.eq.s32.totalorder %s17, 1
      %p207 = por %p205, %p206
      %p208 = scmp.ne.s32.totalorder %s200, %s203
      %p209 = scmp.eq.s32.totalorder %s17, 0
      %p210 = por %p208, %p209
      %p211 = scmp.ne.s32.totalorder %s200, %s203
      %p212 = scmp.eq.s32.totalorder %s22, 1
      %p213 = por %p211, %p212
      %p214 = scmp.ne.s32.totalorder %s203, %s204
      %p215 = scmp.eq.s32.totalorder %s22, 0
      %p216 = por %p214, %p215
      %p217 = scmp.ne.s32.totalorder %s203, %s204
      %p218 = scmp.eq.s32.totalorder %s23, 1
      %p219 = por %p217, %p218
      %p221 = scmp.ne.s32.totalorder %s204, %s220
      %p222 = scmp.eq.s32.totalorder %s23, 0
      %p223 = por %p221, %p222
      %p224 = scmp.le.s32.totalorder 1, %s17
      %p225 = scmp.lt.s32.totalorder %s17, 3
      %p226 = pnand %p224, %p225
      %p227 = pneg %p226
      // Predicated region
      $region9: #{tpu_custom_call.1} parent=5 // pred_check
        _
      $region10: #{tpu_custom_call.1} parent=5 // pred_check_branch
        %229 = sbr.rel (%p226) target = $region12
      $region11: #{tpu_custom_call.1} parent=5 // pred_region
        %s230 = ssub.s32 %s17, 1
        // Predicated region
        $region13: #{tpu_custom_call.1} parent=11 // pred_check
          %p231 = pneg %p64
        $region14: #{tpu_custom_call.1} parent=11 // pred_check_branch
          %233 = sbr.rel (%p231) target = $region16
        $region15: #{tpu_custom_call.1} parent=11 // pred_region
          _
        $region16: #{tpu_custom_call.1} parent=11 // pred_fallthru
          _
        // Predicated region
        $region17: #{tpu_custom_call.1} parent=11 // pred_check
          %p234 = pneg %p85
        $region18: #{tpu_custom_call.1} parent=11 // pred_check_branch
          %236 = sbr.rel (%p234) target = $region20
        $region19: #{tpu_custom_call.1} parent=11 // pred_region
          _
        $region20: #{tpu_custom_call.1} parent=11 // pred_fallthru
          _
        // Predicated region
        $region21: #{tpu_custom_call.1} parent=11 // pred_check
          %p237 = pneg %p106
        $region22: #{tpu_custom_call.1} parent=11 // pred_check_branch
          %239 = sbr.rel (%p237) target = $region24
        $region23: #{tpu_custom_call.1} parent=11 // pred_region
          _
        $region24: #{tpu_custom_call.1} parent=11 // pred_fallthru
          _
        // Predicated region
        $region25: #{tpu_custom_call.1} parent=11 // pred_check
          %p240 = pneg %p127
        $region26: #{tpu_custom_call.1} parent=11 // pred_check_branch
          %242 = sbr.rel (%p240) target = $region28
        $region27: #{tpu_custom_call.1} parent=11 // pred_region
          _
        $region28: #{tpu_custom_call.1} parent=11 // pred_fallthru
          _
        // Predicated region
        $region29: #{tpu_custom_call.1} parent=11 // pred_check
          %p243 = pneg %p148
        $region30: #{tpu_custom_call.1} parent=11 // pred_check_branch
          %245 = sbr.rel (%p243) target = $region32
        $region31: #{tpu_custom_call.1} parent=11 // pred_region
          _
        $region32: #{tpu_custom_call.1} parent=11 // pred_fallthru
          _
        // Predicated region
        $region33: #{tpu_custom_call.1} parent=11 // pred_check
          %p246 = pneg %p169
        $region34: #{tpu_custom_call.1} parent=11 // pred_check_branch
          %248 = sbr.rel (%p246) target = $region36
        $region35: #{tpu_custom_call.1} parent=11 // pred_region
          _
        $region36: #{tpu_custom_call.1} parent=11 // pred_fallthru
          _
        // Predicated region
        $region37: #{tpu_custom_call.1} parent=11 // pred_check
          %p249 = pneg %p190
        $region38: #{tpu_custom_call.1} parent=11 // pred_check_branch
          %251 = sbr.rel (%p249) target = $region40
        $region39: #{tpu_custom_call.1} parent=11 // pred_region
          _
        $region40: #{tpu_custom_call.1} parent=11 // pred_fallthru
          _
      $region12: #{tpu_custom_call.1} parent=5 // pred_fallthru
        _
      %p252 = scmp.lt.s32.totalorder %s17, 2
      // Predicated region
      $region41: #{tpu_custom_call.1} parent=5 // pred_check
        %p253 = pneg %p252
      $region42: #{tpu_custom_call.1} parent=5 // pred_check_branch
        %255 = sbr.rel (%p253) target = $region44
      $region43: #{tpu_custom_call.1} parent=5 // pred_region
        // Predicated region
        $region45: #{tpu_custom_call.1} parent=43 // pred_check
          %p256 = pneg %p37
        $region46: #{tpu_custom_call.1} parent=43 // pred_check_branch
          %258 = sbr.rel (%p256) target = $region48
        $region47: #{tpu_custom_call.1} parent=43 // pred_region
          %p259 = scmp.lt.s32.totalorder %s17, 1
          %s260 = scalar_select %p259, %s17, 1
          %s261 = smul.addr %s260, 2
          %s262 = smul.addr %s261, 8
          %s263 = scalar_lea.vmem %s0, %s262
        $region48: #{tpu_custom_call.1} parent=43 // pred_fallthru
          _
      $region44: #{tpu_custom_call.1} parent=5 // pred_fallthru
        _
      %p264 = scmp.le.s32.totalorder 1, %s17
      %p265 = scmp.lt.s32.totalorder %s17, 3
      %p266 = pnand %p264, %p265
      %p267 = pneg %p266
      // Predicated region
      $region49: #{tpu_custom_call.1} parent=5 // pred_check
        _
      $region50: #{tpu_custom_call.1} parent=5 // pred_check_branch
        %269 = sbr.rel (%p266) target = $region52
      $region51: #{tpu_custom_call.1} parent=5 // pred_region
        %s270 = ssub.s32 %s17, 1
        %p271 = scmp.lt.s32.totalorder %s22, 1
        %s272 = scalar_select %p271, %s22, 1
        %s273 = smul.addr %s272, 2
        %s274 = smul.addr %s273, 8
        %s275 = scalar_lea.vmem %s0, %s274
        %p276 = pneg %p43
        %p277 = pneg %p40
        %p278 = pneg %p64
        %p279 = pneg %p61
        %p280 = pneg %p85
        %p281 = pneg %p82
        %p282 = pneg %p106
        %p283 = pneg %p103
        %p284 = pneg %p127
        %p285 = pneg %p124
        %p286 = pneg %p148
        %p287 = pneg %p145
        %p288 = pneg %p169
        %p289 = pneg %p166
        %p290 = pneg %p190
        %p291 = pneg %p187
        %p292 = pneg %p216
        %p293 = pneg %p213
        %s294 = sand.u32 %s203, 1
        %s295 = scalar_lea.sflag [#allocation3], %s294
        %s296 = sand.u32 %s203, 1
        %s297 = smul.addr %s296, 16
        %s298 = scalar_lea.vmem [#allocation2], %s297
        %p299 = scmp.lt.s32.totalorder %s22, 1
        %s300 = scalar_select %p299, %s22, 1
        %s301 = smul.addr %s300, 2
        %s302 = smul.addr %s301, 8
        %s303 = scalar_lea.vmem %s0, %s302
        %v304 = vld [vmem:[%s303] sm:$0xff]
        %v305 = vld [vmem:[%s303 + $0x8] sm:$0xff]
        %v306 = vld [vmem:[%s1] sm:$0xff]
        %v307 = vld [vmem:[%s1 + $0x8] sm:$0xff]
        %v308 = vld [vmem:[%s1 + $0x10] sm:$0xff]
        %v309 = vld [vmem:[%s1 + $0x18] sm:$0xff]
        %v310 = vld [vmem:[%s1 + $0x20] sm:$0xff]
        %v311 = vld [vmem:[%s1 + $0x28] sm:$0xff]
        %v312 = vld [vmem:[%s1 + $0x30] sm:$0xff]
        %v313 = vld [vmem:[%s1 + $0x38] sm:$0xff]
        %v314 = vld [vmem:[%s1 + $0x40] sm:$0xff]
        %v315 = vld [vmem:[%s1 + $0x48] sm:$0xff]
        %v316 = vld [vmem:[%s1 + $0x50] sm:$0xff]
        %v317 = vld [vmem:[%s1 + $0x58] sm:$0xff]
        %v318 = vld [vmem:[%s1 + $0x60] sm:$0xff]
        %v319 = vld [vmem:[%s1 + $0x68] sm:$0xff]
        %v320 = vld [vmem:[%s1 + $0x70] sm:$0xff]
        %v321 = vld [vmem:[%s1 + $0x78] sm:$0xff]
        %v322 = vld [vmem:[%s1 + $0x80] sm:$0xff]
        %v323 = vld [vmem:[%s1 + $0x88] sm:$0xff]
        %v324 = vld [vmem:[%s1 + $0x90] sm:$0xff]
        %v325 = vld [vmem:[%s1 + $0x98] sm:$0xff]
        %v326 = vld [vmem:[%s1 + $0xa0] sm:$0xff]
        %v327 = vld [vmem:[%s1 + $0xa8] sm:$0xff]
        %v328 = vld [vmem:[%s1 + $0xb0] sm:$0xff]
        %v329 = vld [vmem:[%s1 + $0xb8] sm:$0xff]
        %v330 = vld [vmem:[%s1 + $0xc0] sm:$0xff]
        %v331 = vld [vmem:[%s1 + $0xc8] sm:$0xff]
        %v332 = vld [vmem:[%s1 + $0xd0] sm:$0xff]
        %v333 = vld [vmem:[%s1 + $0xd8] sm:$0xff]
        %v334 = vld [vmem:[%s1 + $0xe0] sm:$0xff]
        %v335 = vld [vmem:[%s1 + $0xe8] sm:$0xff]
        %v336 = vld [vmem:[%s1 + $0xf0] sm:$0xff]
        %v337 = vld [vmem:[%s1 + $0xf8] sm:$0xff]
        %v338 = vld [vmem:[%s1 + $0x100] sm:$0xff]
        %v339 = vld [vmem:[%s1 + $0x108] sm:$0xff]
        %v340 = vld [vmem:[%s1 + $0x110] sm:$0xff]
        %v341 = vld [vmem:[%s1 + $0x118] sm:$0xff]
        %v342 = vld [vmem:[%s1 + $0x120] sm:$0xff]
        %v343 = vld [vmem:[%s1 + $0x128] sm:$0xff]
        %v344 = vld [vmem:[%s1 + $0x130] sm:$0xff]
        %v345 = vld [vmem:[%s1 + $0x138] sm:$0xff]
        %v346 = vld [vmem:[%s1 + $0x140] sm:$0xff]
        %v347 = vld [vmem:[%s1 + $0x148] sm:$0xff]
        %v348 = vld [vmem:[%s1 + $0x150] sm:$0xff]
        %v349 = vld [vmem:[%s1 + $0x158] sm:$0xff]
        %v350 = vld [vmem:[%s1 + $0x160] sm:$0xff]
        %v351 = vld [vmem:[%s1 + $0x168] sm:$0xff]
        %v352 = vld [vmem:[%s1 + $0x170] sm:$0xff]
        %v353 = vld [vmem:[%s1 + $0x178] sm:$0xff]
        %vm354 = vcmask 130048
        %v356 = vsel %vm354, %v306, 0
        %v359 = vsel %vm354, %v307, 0
        %v362 = vsel %vm354, %v308, 0
        %v365 = vsel %vm354, %v309, 0
        %v368 = vsel %vm354, %v310, 0
        %v371 = vsel %vm354, %v311, 0
        %v374 = vsel %vm354, %v312, 0
        %v377 = vsel %vm354, %v313, 0
        %v380 = vsel %vm354, %v314, 0
        %v383 = vsel %vm354, %v315, 0
        %v386 = vsel %vm354, %v316, 0
        %v389 = vsel %vm354, %v317, 0
        %v392 = vsel %vm354, %v318, 0
        %v395 = vsel %vm354, %v319, 0
        %v398 = vsel %vm354, %v320, 0
        %v401 = vsel %vm354, %v321, 0
        %v404 = vsel %vm354, %v322, 0
        %v407 = vsel %vm354, %v323, 0
        %v410 = vsel %vm354, %v324, 0
        %v413 = vsel %vm354, %v325, 0
        %v416 = vsel %vm354, %v326, 0
        %v419 = vsel %vm354, %v327, 0
        %v422 = vsel %vm354, %v328, 0
        %v425 = vsel %vm354, %v329, 0
        %v428 = vsel %vm354, %v330, 0
        %v431 = vsel %vm354, %v331, 0
        %v434 = vsel %vm354, %v332, 0
        %v437 = vsel %vm354, %v333, 0
        %v440 = vsel %vm354, %v334, 0
        %v443 = vsel %vm354, %v335, 0
        %v446 = vsel %vm354, %v336, 0
        %v449 = vsel %vm354, %v337, 0
        %v452 = vsel %vm354, %v338, 0
        %v455 = vsel %vm354, %v339, 0
        %v458 = vsel %vm354, %v340, 0
        %v461 = vsel %vm354, %v341, 0
        %v464 = vsel %vm354, %v342, 0
        %v467 = vsel %vm354, %v343, 0
        %v470 = vsel %vm354, %v344, 0
        %v473 = vsel %vm354, %v345, 0
        %v476 = vsel %vm354, %v346, 0
        %v479 = vsel %vm354, %v347, 0
        %v482 = vsel %vm354, %v348, 0
        %v485 = vsel %vm354, %v349, 0
        %v488 = vsel %vm354, %v350, 0
        %v491 = vsel %vm354, %v351, 0
        %v494 = vsel %vm354, %v352, 0
        %v497 = vsel %vm354, %v353, 0
        %499 = vmatprep.subr.mxu0 0.0
        %500 = vmatpush1.msra.mxu0 %v304
        %501 = vmatprep.subr.mxu0 0.0
        %502 = vmatpush1.msra.mxu0 %v305
        %503 = vmatprep.subr.mxu0 0.0
        %504 = vmatpush1.msra.mxu0 0.0
        %505 = vmatprep.subr.mxu0 0.0
        %506 = vmatpush1.msra.mxu0 0.0
        %507 = vmatprep.subr.mxu0 0.0
        %508 = vmatpush1.msra.mxu0 0.0
        %509 = vmatprep.subr.mxu0 0.0
        %510 = vmatpush1.msra.mxu0 0.0
        %511 = vmatprep.subr.mxu0 0.0
        %512 = vmatpush1.msra.mxu0 0.0
        %513 = vmatprep.subr.mxu0 0.0
        %514 = vmatpush1.msra.mxu0 0.0
        %515 = vmatprep.subr.mxu0 0.0
        %516 = vmatpush1.msra.mxu0 0.0
        %517 = vmatprep.subr.mxu0 0.0
        %518 = vmatpush1.msra.mxu0 0.0
        %519 = vmatprep.subr.mxu0 0.0
        %520 = vmatpush1.msra.mxu0 0.0
        %521 = vmatprep.subr.mxu0 0.0
        %522 = vmatpush1.msra.mxu0 0.0
        %523 = vmatprep.subr.mxu0 0.0
        %524 = vmatpush1.msra.mxu0 0.0
        %525 = vmatprep.subr.mxu0 0.0
        %526 = vmatpush1.msra.mxu0 0.0
        %527 = vmatprep.subr.mxu0 0.0
        %528 = vmatpush1.msra.mxu0 0.0
        %529 = vmatprep.subr.mxu0 0.0
        %530 = vmatpush1.msra.mxu0 0.0
        %531 = vmatprep.subr.mxu0 0.0
        %532 = vmatpush1.msra.mxu0 0.0
        %533 = vmatprep.subr.mxu0 0.0
        %534 = vmatpush1.msra.mxu0 0.0
        %535 = vmatprep.subr.mxu0 0.0
        %536 = vmatpush1.msra.mxu0 0.0
        %537 = vmatprep.subr.mxu0 0.0
        %538 = vmatpush1.msra.mxu0 0.0
        %539 = vmatprep.subr.mxu0 0.0
        %540 = vmatpush1.msra.mxu0 0.0
        %541 = vmatprep.subr.mxu0 0.0
        %542 = vmatpush1.msra.mxu0 0.0
        %543 = vmatprep.subr.mxu0 0.0
        %544 = vmatpush1.msra.mxu0 0.0
        %545 = vmatprep.subr.mxu0 0.0
        %546 = vmatpush1.msra.mxu0 0.0
        %547 = vmatprep.subr.mxu0 0.0
        %548 = vmatpush1.msra.mxu0 0.0
        %549 = vmatprep.subr.mxu0 0.0
        %550 = vmatpush1.msra.mxu0 0.0
        %551 = vmatprep.subr.mxu0 0.0
        %552 = vmatpush1.msra.mxu0 0.0
        %553 = vmatprep.subr.mxu0 0.0
        %554 = vmatpush1.msra.mxu0 0.0
        %555 = vmatprep.subr.mxu0 0.0
        %556 = vmatpush1.msra.mxu0 0.0
        %557 = vmatprep.subr.mxu0 0.0
        %558 = vmatpush1.msra.mxu0 0.0
        %559 = vmatprep.subr.mxu0 0.0
        %560 = vmatpush1.msra.mxu0 0.0
        %561 = vmatprep.subr.mxu0 0.0
        %562 = vmatpush1.msra.mxu0 0.0
        %563 = vmatprep.mubr.f32.mxu0 0.0
        %564 = vmatmul.mubr.f32.gmra.mrb[0].mxu0 %v356
        %v565 = vpop.f32.mrb[0].mxu0
        %v566 = vadd.f32 0.0, %v565
        %v567 = vpop.f32.mrb[0].mxu0
        %568 = vmatprep.mubr.f32.mxu0 0.0
        %569 = vmatmul.mubr.f32.gmra.mrb[0].mxu0 %v359
        %v570 = vpop.f32.mrb[0].mxu0
        %v571 = vadd.f32 0.0, %v570
        %v572 = vpop.f32.mrb[0].mxu0
        %573 = vmatprep.mubr.f32.mxu0 0.0
        %574 = vmatmul.mubr.f32.gmra.mrb[0].mxu0 %v362
        %v575 = vpop.f32.mrb[0].mxu0
        %v576 = vadd.f32 0.0, %v575
        %v577 = vpop.f32.mrb[0].mxu0
        %578 = vmatprep.mubr.f32.mxu0 0.0
        %579 = vmatmul.mubr.f32.gmra.mrb[0].mxu0 %v365
        %v580 = vpop.f32.mrb[0].mxu0
        %v581 = vadd.f32 0.0, %v580
        %v582 = vpop.f32.mrb[0].mxu0
        %583 = vmatprep.mubr.f32.mxu0 0.0
        %584 = vmatmul.mubr.f32.gmra.mrb[0].mxu0 %v368
        %v585 = vpop.f32.mrb[0].mxu0
        %v586 = vadd.f32 0.0, %v585
        %v587 = vpop.f32.mrb[0].mxu0
        %588 = vmatprep.mubr.f32.mxu0 0.0
        %589 = vmatmul.mubr.f32.gmra.mrb[0].mxu0 %v371
        %v590 = vpop.f32.mrb[0].mxu0
        %v591 = vadd.f32 0.0, %v590
        %v592 = vpop.f32.mrb[0].mxu0
        %593 = vmatprep.mubr.f32.mxu0 0.0
        %594 = vmatmul.mubr.f32.gmra.mrb[0].mxu0 %v374
        %v595 = vpop.f32.mrb[0].mxu0
        %v596 = vadd.f32 0.0, %v595
        %v597 = vpop.f32.mrb[0].mxu0
        %598 = vmatprep.mubr.f32.mxu0 0.0
        %599 = vmatmul.mubr.f32.gmra.mrb[0].mxu0 %v377
        %v600 = vpop.f32.mrb[0].mxu0
        %v601 = vadd.f32 0.0, %v600
        %v602 = vpop.f32.mrb[0].mxu0
        %603 = vmatprep.mubr.f32.mxu0 0.0
        %604 = vmatmul.mubr.f32.gmra.mrb[0].mxu0 %v380
        %v605 = vpop.f32.mrb[0].mxu0
        %v606 = vadd.f32 0.0, %v605
        %v607 = vpop.f32.mrb[0].mxu0
        %608 = vmatprep.mubr.f32.mxu0 0.0
        %609 = vmatmul.mubr.f32.gmra.mrb[0].mxu0 %v383
        %v610 = vpop.f32.mrb[0].mxu0
        %v611 = vadd.f32 0.0, %v610
        %v612 = vpop.f32.mrb[0].mxu0
        %613 = vmatprep.mubr.f32.mxu0 0.0
        %614 = vmatmul.mubr.f32.gmra.mrb[0].mxu0 %v386
        %v615 = vpop.f32.mrb[0].mxu0
        %v616 = vadd.f32 0.0, %v615
        %v617 = vpop.f32.mrb[0].mxu0
        %618 = vmatprep.mubr.f32.mxu0 0.0
        %619 = vmatmul.mubr.f32.gmra.mrb[0].mxu0 %v389
        %v620 = vpop.f32.mrb[0].mxu0
        %v621 = vadd.f32 0.0, %v620
        %v622 = vpop.f32.mrb[0].mxu0
        %623 = vmatprep.mubr.f32.mxu0 0.0
        %624 = vmatmul.mubr.f32.gmra.mrb[0].mxu0 %v392
        %v625 = vpop.f32.mrb[0].mxu0
        %v626 = vadd.f32 0.0, %v625
        %v627 = vpop.f32.mrb[0].mxu0
        %628 = vmatprep.mubr.f32.mxu0 0.0
        %629 = vmatmul.mubr.f32.gmra.mrb[0].mxu0 %v395
        %v630 = vpop.f32.mrb[0].mxu0
        %v631 = vadd.f32 0.0, %v630
        %v632 = vpop.f32.mrb[0].mxu0
        %633 = vmatprep.mubr.f32.mxu0 0.0
        %634 = vmatmul.mubr.f32.gmra.mrb[0].mxu0 %v398
        %v635 = vpop.f32.mrb[0].mxu0
        %v636 = vadd.f32 0.0, %v635
        %v637 = vpop.f32.mrb[0].mxu0
        %638 = vmatprep.mubr.f32.mxu0 0.0
        %639 = vmatmul.mubr.f32.gmra.mrb[0].mxu0 %v401
        %v640 = vpop.f32.mrb[0].mxu0
        %v641 = vadd.f32 0.0, %v640
        %v642 = vpop.f32.mrb[0].mxu0
        %643 = vmatprep.mubr.f32.mxu0 0.0
        %644 = vmatmul.mubr.f32.gmra.mrb[0].mxu0 %v404
        %v645 = vpop.f32.mrb[0].mxu0
        %v646 = vadd.f32 0.0, %v645
        %v647 = vpop.f32.mrb[0].mxu0
        %648 = vmatprep.mubr.f32.mxu0 0.0
        %649 = vmatmul.mubr.f32.gmra.mrb[0].mxu0 %v407
        %v650 = vpop.f32.mrb[0].mxu0
        %v651 = vadd.f32 0.0, %v650
        %v652 = vpop.f32.mrb[0].mxu0
        %653 = vmatprep.mubr.f32.mxu0 0.0
        %654 = vmatmul.mubr.f32.gmra.mrb[0].mxu0 %v410
        %v655 = vpop.f32.mrb[0].mxu0
        %v656 = vadd.f32 0.0, %v655
        %v657 = vpop.f32.mrb[0].mxu0
        %658 = vmatprep.mubr.f32.mxu0 0.0
        %659 = vmatmul.mubr.f32.gmra.mrb[0].mxu0 %v413
        %v660 = vpop.f32.mrb[0].mxu0
        %v661 = vadd.f32 0.0, %v660
        %v662 = vpop.f32.mrb[0].mxu0
        %663 = vmatprep.mubr.f32.mxu0 0.0
        %664 = vmatmul.mubr.f32.gmra.mrb[0].mxu0 %v416
        %v665 = vpop.f32.mrb[0].mxu0
        %v666 = vadd.f32 0.0, %v665
        %v667 = vpop.f32.mrb[0].mxu0
        %668 = vmatprep.mubr.f32.mxu0 0.0
        %669 = vmatmul.mubr.f32.gmra.mrb[0].mxu0 %v419
        %v670 = vpop.f32.mrb[0].mxu0
        %v671 = vadd.f32 0.0, %v670
        %v672 = vpop.f32.mrb[0].mxu0
        %673 = vmatprep.mubr.f32.mxu0 0.0
        %674 = vmatmul.mubr.f32.gmra.mrb[0].mxu0 %v422
        %v675 = vpop.f32.mrb[0].mxu0
        %v676 = vadd.f32 0.0, %v675
        %v677 = vpop.f32.mrb[0].mxu0
        %678 = vmatprep.mubr.f32.mxu0 0.0
        %679 = vmatmul.mubr.f32.gmra.mrb[0].mxu0 %v425
        %v680 = vpop.f32.mrb[0].mxu0
        %v681 = vadd.f32 0.0, %v680
        %v682 = vpop.f32.mrb[0].mxu0
        %683 = vmatprep.mubr.f32.mxu0 0.0
        %684 = vmatmul.mubr.f32.gmra.mrb[0].mxu0 %v428
        %v685 = vpop.f32.mrb[0].mxu0
        %v686 = vadd.f32 0.0, %v685
        %v687 = vpop.f32.mrb[0].mxu0
        %688 = vmatprep.mubr.f32.mxu0 0.0
        %689 = vmatmul.mubr.f32.gmra.mrb[0].mxu0 %v431
        %v690 = vpop.f32.mrb[0].mxu0
        %v691 = vadd.f32 0.0, %v690
        %v692 = vpop.f32.mrb[0].mxu0
        %693 = vmatprep.mubr.f32.mxu0 0.0
        %694 = vmatmul.mubr.f32.gmra.mrb[0].mxu0 %v434
        %v695 = vpop.f32.mrb[0].mxu0
        %v696 = vadd.f32 0.0, %v695
        %v697 = vpop.f32.mrb[0].mxu0
        %698 = vmatprep.mubr.f32.mxu0 0.0
        %699 = vmatmul.mubr.f32.gmra.mrb[0].mxu0 %v437
        %v700 = vpop.f32.mrb[0].mxu0
        %v701 = vadd.f32 0.0, %v700
        %v702 = vpop.f32.mrb[0].mxu0
        %703 = vmatprep.mubr.f32.mxu0 0.0
        %704 = vmatmul.mubr.f32.gmra.mrb[0].mxu0 %v440
        %v705 = vpop.f32.mrb[0].mxu0
        %v706 = vadd.f32 0.0, %v705
        %v707 = vpop.f32.mrb[0].mxu0
        %708 = vmatprep.mubr.f32.mxu0 0.0
        %709 = vmatmul.mubr.f32.gmra.mrb[0].mxu0 %v443
        %v710 = vpop.f32.mrb[0].mxu0
        %v711 = vadd.f32 0.0, %v710
        %v712 = vpop.f32.mrb[0].mxu0
        %713 = vmatprep.mubr.f32.mxu0 0.0
        %714 = vmatmul.mubr.f32.gmra.mrb[0].mxu0 %v446
        %v715 = vpop.f32.mrb[0].mxu0
        %v716 = vadd.f32 0.0, %v715
        %v717 = vpop.f32.mrb[0].mxu0
        %718 = vmatprep.mubr.f32.mxu0 0.0
        %719 = vmatmul.mubr.f32.gmra.mrb[0].mxu0 %v449
        %v720 = vpop.f32.mrb[0].mxu0
        %v721 = vadd.f32 0.0, %v720
        %v722 = vpop.f32.mrb[0].mxu0
        %723 = vmatprep.mubr.f32.mxu0 0.0
        %724 = vmatmul.mubr.f32.gmra.mrb[0].mxu0 %v452
        %v725 = vpop.f32.mrb[0].mxu0
        %v726 = vadd.f32 0.0, %v725
        %v727 = vpop.f32.mrb[0].mxu0
        %728 = vmatprep.mubr.f32.mxu0 0.0
        %729 = vmatmul.mubr.f32.gmra.mrb[0].mxu0 %v455
        %v730 = vpop.f32.mrb[0].mxu0
        %v731 = vadd.f32 0.0, %v730
        %v732 = vpop.f32.mrb[0].mxu0
        %733 = vmatprep.mubr.f32.mxu0 0.0
        %734 = vmatmul.mubr.f32.gmra.mrb[0].mxu0 %v458
        %v735 = vpop.f32.mrb[0].mxu0
        %v736 = vadd.f32 0.0, %v735
        %v737 = vpop.f32.mrb[0].mxu0
        %738 = vmatprep.mubr.f32.mxu0 0.0
        %739 = vmatmul.mubr.f32.gmra.mrb[0].mxu0 %v461
        %v740 = vpop.f32.mrb[0].mxu0
        %v741 = vadd.f32 0.0, %v740
        %v742 = vpop.f32.mrb[0].mxu0
        %743 = vmatprep.mubr.f32.mxu0 0.0
        %744 = vmatmul.mubr.f32.gmra.mrb[0].mxu0 %v464
        %v745 = vpop.f32.mrb[0].mxu0
        %v746 = vadd.f32 0.0, %v745
        %v747 = vpop.f32.mrb[0].mxu0
        %748 = vmatprep.mubr.f32.mxu0 0.0
        %749 = vmatmul.mubr.f32.gmra.mrb[0].mxu0 %v467
        %v750 = vpop.f32.mrb[0].mxu0
        %v751 = vadd.f32 0.0, %v750
        %v752 = vpop.f32.mrb[0].mxu0
        %753 = vmatprep.mubr.f32.mxu0 0.0
        %754 = vmatmul.mubr.f32.gmra.mrb[0].mxu0 %v470
        %v755 = vpop.f32.mrb[0].mxu0
        %v756 = vadd.f32 0.0, %v755
        %v757 = vpop.f32.mrb[0].mxu0
        %758 = vmatprep.mubr.f32.mxu0 0.0
        %759 = vmatmul.mubr.f32.gmra.mrb[0].mxu0 %v473
        %v760 = vpop.f32.mrb[0].mxu0
        %v761 = vadd.f32 0.0, %v760
        %v762 = vpop.f32.mrb[0].mxu0
        %763 = vmatprep.mubr.f32.mxu0 0.0
        %764 = vmatmul.mubr.f32.gmra.mrb[0].mxu0 %v476
        %v765 = vpop.f32.mrb[0].mxu0
        %v766 = vadd.f32 0.0, %v765
        %v767 = vpop.f32.mrb[0].mxu0
        %768 = vmatprep.mubr.f32.mxu0 0.0
        %769 = vmatmul.mubr.f32.gmra.mrb[0].mxu0 %v479
        %v770 = vpop.f32.mrb[0].mxu0
        %v771 = vadd.f32 0.0, %v770
        %v772 = vpop.f32.mrb[0].mxu0
        %773 = vmatprep.mubr.f32.mxu0 0.0
        %774 = vmatmul.mubr.f32.gmra.mrb[0].mxu0 %v482
        %v775 = vpop.f32.mrb[0].mxu0
        %v776 = vadd.f32 0.0, %v775
        %v777 = vpop.f32.mrb[0].mxu0
        %778 = vmatprep.mubr.f32.mxu0 0.0
        %779 = vmatmul.mubr.f32.gmra.mrb[0].mxu0 %v485
        %v780 = vpop.f32.mrb[0].mxu0
        %v781 = vadd.f32 0.0, %v780
        %v782 = vpop.f32.mrb[0].mxu0
        %783 = vmatprep.mubr.f32.mxu0 0.0
        %784 = vmatmul.mubr.f32.gmra.mrb[0].mxu0 %v488
        %v785 = vpop.f32.mrb[0].mxu0
        %v786 = vadd.f32 0.0, %v785
        %v787 = vpop.f32.mrb[0].mxu0
        %788 = vmatprep.mubr.f32.mxu0 0.0
        %789 = vmatmul.mubr.f32.gmra.mrb[0].mxu0 %v491
        %v790 = vpop.f32.mrb[0].mxu0
        %v791 = vadd.f32 0.0, %v790
        %v792 = vpop.f32.mrb[0].mxu0
        %793 = vmatprep.mubr.f32.mxu0 0.0
        %794 = vmatmul.mubr.f32.gmra.mrb[0].mxu0 %v494
        %v795 = vpop.f32.mrb[0].mxu0
        %v796 = vadd.f32 0.0, %v795
        %v797 = vpop.f32.mrb[0].mxu0
        %798 = vmatprep.mubr.f32.mxu0 0.0
        %799 = vmatmul.mubr.f32.gmra.mrb[0].mxu0 %v497
        %v800 = vpop.f32.mrb[0].mxu0
        %v801 = vadd.f32 0.0, %v800
        %v802 = vpop.f32.mrb[0].mxu0
        %803 = vdwg.mxu0
        %v804 = vmax.f32 %v566, %v571
        %v805 = vmax.f32 %v804, %v576
        %v806 = vmax.f32 %v805, %v581
        %v807 = vrot.slane %v806, 4
        %v808 = vmax.f32 %v806, %v807
        %v809 = vrot.slane %v808, 2
        %v810 = vmax.f32 %v808, %v809
        %v811 = vrot.slane %v810, 1
        %v812 = vmax.f32 %v810, %v811
        %v813 = vmax.f32 %v586, %v591
        %v814 = vmax.f32 %v813, %v596
        %v815 = vmax.f32 %v814, %v601
        %v816 = vrot.slane %v815, 4
        %v817 = vmax.f32 %v815, %v816
        %v818 = vrot.slane %v817, 2
        %v819 = vmax.f32 %v817, %v818
        %v820 = vrot.slane %v819, 1
        %v821 = vmax.f32 %v819, %v820
        %v822 = vmax.f32 %v606, %v611
        %v823 = vmax.f32 %v822, %v616
        %v824 = vmax.f32 %v823, %v621
        %v825 = vrot.slane %v824, 4
        %v826 = vmax.f32 %v824, %v825
        %v827 = vrot.slane %v826, 2
        %v828 = vmax.f32 %v826, %v827
        %v829 = vrot.slane %v828, 1
        %v830 = vmax.f32 %v828, %v829
        %v831 = vmax.f32 %v626, %v631
        %v832 = vmax.f32 %v831, %v636
        %v833 = vmax.f32 %v832, %v641
        %v834 = vrot.slane %v833, 4
        %v835 = vmax.f32 %v833, %v834
        %v836 = vrot.slane %v835, 2
        %v837 = vmax.f32 %v835, %v836
        %v838 = vrot.slane %v837, 1
        %v839 = vmax.f32 %v837, %v838
        %v840 = vsub.f32 %v566, %v812
        %v841 = vsub.f32 %v571, %v812
        %v842 = vsub.f32 %v576, %v812
        %v843 = vsub.f32 %v581, %v812
        %v844 = vsub.f32 %v586, %v821
        %v845 = vsub.f32 %v591, %v821
        %v846 = vsub.f32 %v596, %v821
        %v847 = vsub.f32 %v601, %v821
        %v848 = vsub.f32 %v606, %v830
        %v849 = vsub.f32 %v611, %v830
        %v850 = vsub.f32 %v616, %v830
        %v851 = vsub.f32 %v621, %v830
        %v852 = vsub.f32 %v626, %v839
        %v853 = vsub.f32 %v631, %v839
        %v854 = vsub.f32 %v636, %v839
        %v855 = vsub.f32 %v641, %v839
        %v856 = vmul.f32 %v840, 1.442695
        %v857 = vpow.pop %v856
        %v858 = vmul.f32 %v841, 1.442695
        %v859 = vpow.pop %v858
        %v860 = vmul.f32 %v842, 1.442695
        %v861 = vpow.pop %v860
        %v862 = vmul.f32 %v843, 1.442695
        %v863 = vpow.pop %v862
        %v864 = vmul.f32 %v844, 1.442695
        %v865 = vpow.pop %v864
        %v866 = vmul.f32 %v845, 1.442695
        %v867 = vpow.pop %v866
        %v868 = vmul.f32 %v846, 1.442695
        %v869 = vpow.pop %v868
        %v870 = vmul.f32 %v847, 1.442695
        %v871 = vpow.pop %v870
        %v872 = vmul.f32 %v848, 1.442695
        %v873 = vpow.pop %v872
        %v874 = vmul.f32 %v849, 1.442695
        %v875 = vpow.pop %v874
        %v876 = vmul.f32 %v850, 1.442695
        %v877 = vpow.pop %v876
        %v878 = vmul.f32 %v851, 1.442695
        %v879 = vpow.pop %v878
        %v880 = vmul.f32 %v852, 1.442695
        %v881 = vpow.pop %v880
        %v882 = vmul.f32 %v853, 1.442695
        %v883 = vpow.pop %v882
        %v884 = vmul.f32 %v854, 1.442695
        %v885 = vpow.pop %v884
        %v886 = vmul.f32 %v855, 1.442695
        %v887 = vpow.pop %v886
        %v888 = vadd.f32 %v857, %v859
        %v889 = vadd.f32 %v888, %v861
        %v890 = vadd.f32 %v889, %v863
        %v891 = vrot.slane %v890, 4
        %v892 = vadd.f32 %v890, %v891
        %v893 = vrot.slane %v892, 2
        %v894 = vadd.f32 %v892, %v893
        %v895 = vrot.slane %v894, 1
        %v896 = vadd.f32 %v894, %v895
        %v897 = vadd.f32 %v865, %v867
        %v898 = vadd.f32 %v897, %v869
        %v899 = vadd.f32 %v898, %v871
        %v900 = vrot.slane %v899, 4
        %v901 = vadd.f32 %v899, %v900
        %v902 = vrot.slane %v901, 2
        %v903 = vadd.f32 %v901, %v902
        %v904 = vrot.slane %v903, 1
        %v905 = vadd.f32 %v903, %v904
        %v906 = vadd.f32 %v873, %v875
        %v907 = vadd.f32 %v906, %v877
        %v908 = vadd.f32 %v907, %v879
        %v909 = vrot.slane %v908, 4
        %v910 = vadd.f32 %v908, %v909
        %v911 = vrot.slane %v910, 2
        %v912 = vadd.f32 %v910, %v911
        %v913 = vrot.slane %v912, 1
        %v914 = vadd.f32 %v912, %v913
        %v915 = vadd.f32 %v881, %v883
        %v916 = vadd.f32 %v915, %v885
        %v917 = vadd.f32 %v916, %v887
        %v918 = vrot.slane %v917, 4
        %v919 = vadd.f32 %v917, %v918
        %v920 = vrot.slane %v919, 2
        %v921 = vadd.f32 %v919, %v920
        %v922 = vrot.slane %v921, 1
        %v923 = vadd.f32 %v921, %v922
        %v924 = vrcp.pop %v896
        %v925 = vmul.f32 %v857, %v924
        %v926 = vmul.f32 %v859, %v924
        %v927 = vmul.f32 %v861, %v924
        %v928 = vmul.f32 %v863, %v924
        %v929 = vrcp.pop %v905
        %v930 = vmul.f32 %v865, %v929
        %v931 = vmul.f32 %v867, %v929
        %v932 = vmul.f32 %v869, %v929
        %v933 = vmul.f32 %v871, %v929
        %v934 = vrcp.pop %v914
        %v935 = vmul.f32 %v873, %v934
        %v936 = vmul.f32 %v875, %v934
        %v937 = vmul.f32 %v877, %v934
        %v938 = vmul.f32 %v879, %v934
        %v939 = vrcp.pop %v923
        %v940 = vmul.f32 %v881, %v939
        %v941 = vmul.f32 %v883, %v939
        %v942 = vmul.f32 %v885, %v939
        %v943 = vmul.f32 %v887, %v939
        %944 = vmax.xlane.f32.xlu0 %v646
        %v945 = vpop.xlane.xlu0 %944
        %946 = vmax.xlane.f32.xlu0 %v651
        %v947 = vpop.xlane.xlu0 %946
        %948 = vmax.xlane.f32.xlu0 %v656
        %v949 = vpop.xlane.xlu0 %948
        %950 = vmax.xlane.f32.xlu0 %v661
        %v951 = vpop.xlane.xlu0 %950
        %952 = vmax.xlane.f32.xlu0 %v666
        %v953 = vpop.xlane.xlu0 %952
        %954 = vmax.xlane.f32.xlu0 %v671
        %v955 = vpop.xlane.xlu0 %954
        %956 = vmax.xlane.f32.xlu0 %v676
        %v957 = vpop.xlane.xlu0 %956
        %958 = vmax.xlane.f32.xlu0 %v681
        %v959 = vpop.xlane.xlu0 %958
        %960 = vmax.xlane.f32.xlu0 %v686
        %v961 = vpop.xlane.xlu0 %960
        %962 = vmax.xlane.f32.xlu0 %v691
        %v963 = vpop.xlane.xlu0 %962
        %964 = vmax.xlane.f32.xlu0 %v696
        %v965 = vpop.xlane.xlu0 %964
        %966 = vmax.xlane.f32.xlu0 %v701
        %v967 = vpop.xlane.xlu0 %966
        %968 = vmax.xlane.f32.xlu0 %v706
        %v969 = vpop.xlane.xlu0 %968
        %970 = vmax.xlane.f32.xlu0 %v711
        %v971 = vpop.xlane.xlu0 %970
        %972 = vmax.xlane.f32.xlu0 %v716
        %v973 = vpop.xlane.xlu0 %972
        %974 = vmax.xlane.f32.xlu0 %v721
        %v975 = vpop.xlane.xlu0 %974
        %v976 = vsub.f32 %v646, %v945
        %v977 = vsub.f32 %v651, %v947
        %v978 = vsub.f32 %v656, %v949
        %v979 = vsub.f32 %v661, %v951
        %v980 = vsub.f32 %v666, %v953
        %v981 = vsub.f32 %v671, %v955
        %v982 = vsub.f32 %v676, %v957
        %v983 = vsub.f32 %v681, %v959
        %v984 = vsub.f32 %v686, %v961
        %v985 = vsub.f32 %v691, %v963
        %v986 = vsub.f32 %v696, %v965
        %v987 = vsub.f32 %v701, %v967
        %v988 = vsub.f32 %v706, %v969
        %v989 = vsub.f32 %v711, %v971
        %v990 = vsub.f32 %v716, %v973
        %v991 = vsub.f32 %v721, %v975
        %v992 = vmul.f32 %v976, 1.442695
        %v993 = vpow.pop %v992
        %v994 = vmul.f32 %v977, 1.442695
        %v995 = vpow.pop %v994
        %v996 = vmul.f32 %v978, 1.442695
        %v997 = vpow.pop %v996
        %v998 = vmul.f32 %v979, 1.442695
        %v999 = vpow.pop %v998
        %v1000 = vmul.f32 %v980, 1.442695
        %v1001 = vpow.pop %v1000
        %v1002 = vmul.f32 %v981, 1.442695
        %v1003 = vpow.pop %v1002
        %v1004 = vmul.f32 %v982, 1.442695
        %v1005 = vpow.pop %v1004
        %v1006 = vmul.f32 %v983, 1.442695
        %v1007 = vpow.pop %v1006
        %v1008 = vmul.f32 %v984, 1.442695
        %v1009 = vpow.pop %v1008
        %v1010 = vmul.f32 %v985, 1.442695
        %v1011 = vpow.pop %v1010
        %v1012 = vmul.f32 %v986, 1.442695
        %v1013 = vpow.pop %v1012
        %v1014 = vmul.f32 %v987, 1.442695
        %v1015 = vpow.pop %v1014
        %v1016 = vmul.f32 %v988, 1.442695
        %v1017 = vpow.pop %v1016
        %v1018 = vmul.f32 %v989, 1.442695
        %v1019 = vpow.pop %v1018
        %v1020 = vmul.f32 %v990, 1.442695
        %v1021 = vpow.pop %v1020
        %v1022 = vmul.f32 %v991, 1.442695
        %v1023 = vpow.pop %v1022
        %1024 = vadd.xlane.f32.xlu0 %v993
        %v1025 = vpop.xlane.xlu0 %1024
        %1026 = vadd.xlane.f32.xlu0 %v995
        %v1027 = vpop.xlane.xlu0 %1026
        %1028 = vadd.xlane.f32.xlu0 %v997
        %v1029 = vpop.xlane.xlu0 %1028
        %1030 = vadd.xlane.f32.xlu0 %v999
        %v1031 = vpop.xlane.xlu0 %1030
        %1032 = vadd.xlane.f32.xlu0 %v1001
        %v1033 = vpop.xlane.xlu0 %1032
        %1034 = vadd.xlane.f32.xlu0 %v1003
        %v1035 = vpop.xlane.xlu0 %1034
        %1036 = vadd.xlane.f32.xlu0 %v1005
        %v1037 = vpop.xlane.xlu0 %1036
        %1038 = vadd.xlane.f32.xlu0 %v1007
        %v1039 = vpop.xlane.xlu0 %1038
        %1040 = vadd.xlane.f32.xlu0 %v1009
        %v1041 = vpop.xlane.xlu0 %1040
        %1042 = vadd.xlane.f32.xlu0 %v1011
        %v1043 = vpop.xlane.xlu0 %1042
        %1044 = vadd.xlane.f32.xlu0 %v1013
        %v1045 = vpop.xlane.xlu0 %1044
        %1046 = vadd.xlane.f32.xlu0 %v1015
        %v1047 = vpop.xlane.xlu0 %1046
        %1048 = vadd.xlane.f32.xlu0 %v1017
        %v1049 = vpop.xlane.xlu0 %1048
        %1050 = vadd.xlane.f32.xlu0 %v1019
        %v1051 = vpop.xlane.xlu0 %1050
        %1052 = vadd.xlane.f32.xlu0 %v1021
        %v1053 = vpop.xlane.xlu0 %1052
        %1054 = vadd.xlane.f32.xlu0 %v1023
        %v1055 = vpop.xlane.xlu0 %1054
        %v1056 = vrcp.pop %v1025
        %v1057 = vmul.f32 %v993, %v1056
        %v1058 = vrcp.pop %v1027
        %v1059 = vmul.f32 %v995, %v1058
        %v1060 = vrcp.pop %v1029
        %v1061 = vmul.f32 %v997, %v1060
        %v1062 = vrcp.pop %v1031
        %v1063 = vmul.f32 %v999, %v1062
        %v1064 = vrcp.pop %v1033
        %v1065 = vmul.f32 %v1001, %v1064
        %v1066 = vrcp.pop %v1035
        %v1067 = vmul.f32 %v1003, %v1066
        %v1068 = vrcp.pop %v1037
        %v1069 = vmul.f32 %v1005, %v1068
        %v1070 = vrcp.pop %v1039
        %v1071 = vmul.f32 %v1007, %v1070
        %v1072 = vrcp.pop %v1041
        %v1073 = vmul.f32 %v1009, %v1072
        %v1074 = vrcp.pop %v1043
        %v1075 = vmul.f32 %v1011, %v1074
        %v1076 = vrcp.pop %v1045
        %v1077 = vmul.f32 %v1013, %v1076
        %v1078 = vrcp.pop %v1047
        %v1079 = vmul.f32 %v1015, %v1078
        %v1080 = vrcp.pop %v1049
        %v1081 = vmul.f32 %v1017, %v1080
        %v1082 = vrcp.pop %v1051
        %v1083 = vmul.f32 %v1019, %v1082
        %v1084 = vrcp.pop %v1053
        %v1085 = vmul.f32 %v1021, %v1084
        %v1086 = vrcp.pop %v1055
        %v1087 = vmul.f32 %v1023, %v1086
        %1088 = vmatprep.subr.mxu0 0.0
        %1089 = vmatpush1.xpose.msra.mxu0 %v726
        %1090 = vmatprep.subr.mxu0 0.0
        %1091 = vmatpush1.xpose.msra.mxu0 %v731
        %1092 = vmatprep.subr.mxu0 0.0
        %1093 = vmatpush1.xpose.msra.mxu0 %v736
        %1094 = vmatprep.subr.mxu0 0.0
        %1095 = vmatpush1.xpose.msra.mxu0 %v741
        %1096 = vmatprep.subr.mxu0 0.0
        %1097 = vmatpush1.xpose.msra.mxu0 %v746
        %1098 = vmatprep.subr.mxu0 0.0
        %1099 = vmatpush1.xpose.msra.mxu0 %v751
        %1100 = vmatprep.subr.mxu0 0.0
        %1101 = vmatpush1.xpose.msra.mxu0 %v756
        %1102 = vmatprep.subr.mxu0 0.0
        %1103 = vmatpush1.xpose.msra.mxu0 %v761
        %1104 = vmatprep.subr.mxu0 0.0
        %1105 = vmatpush1.xpose.msra.mxu0 %v766
        %1106 = vmatprep.subr.mxu0 0.0
        %1107 = vmatpush1.xpose.msra.mxu0 %v771
        %1108 = vmatprep.subr.mxu0 0.0
        %1109 = vmatpush1.xpose.msra.mxu0 %v776
        %1110 = vmatprep.subr.mxu0 0.0
        %1111 = vmatpush1.xpose.msra.mxu0 %v781
        %1112 = vmatprep.subr.mxu0 0.0
        %1113 = vmatpush1.xpose.msra.mxu0 %v786
        %1114 = vmatprep.subr.mxu0 0.0
        %1115 = vmatpush1.xpose.msra.mxu0 %v791
        %1116 = vmatprep.subr.mxu0 0.0
        %1117 = vmatpush1.xpose.msra.mxu0 %v796
        %1118 = vmatprep.subr.mxu0 0.0
        %1119 = vmatpush1.xpose.msra.mxu0 %v801
        %1120 = vmatprep.subr.mxu0 0.0
        %1121 = vmatpush1.xpose.msra.mxu0 0.0
        %1122 = vmatprep.subr.mxu0 0.0
        %1123 = vmatpush1.xpose.msra.mxu0 0.0
        %1124 = vmatprep.subr.mxu0 0.0
        %1125 = vmatpush1.xpose.msra.mxu0 0.0
        %1126 = vmatprep.subr.mxu0 0.0
        %1127 = vmatpush1.xpose.msra.mxu0 0.0
        %1128 = vmatprep.subr.mxu0 0.0
        %1129 = vmatpush1.xpose.msra.mxu0 0.0
        %1130 = vmatprep.subr.mxu0 0.0
        %1131 = vmatpush1.xpose.msra.mxu0 0.0
        %1132 = vmatprep.subr.mxu0 0.0
        %1133 = vmatpush1.xpose.msra.mxu0 0.0
        %1134 = vmatprep.subr.mxu0 0.0
        %1135 = vmatpush1.xpose.msra.mxu0 0.0
        %1136 = vmatprep.subr.mxu0 0.0
        %1137 = vmatpush1.xpose.msra.mxu0 0.0
        %1138 = vmatprep.subr.mxu0 0.0
        %1139 = vmatpush1.xpose.msra.mxu0 0.0
        %1140 = vmatprep.subr.mxu0 0.0
        %1141 = vmatpush1.xpose.msra.mxu0 0.0
        %1142 = vmatprep.subr.mxu0 0.0
        %1143 = vmatpush1.xpose.msra.mxu0 0.0
        %1144 = vmatprep.subr.mxu0 0.0
        %1145 = vmatpush1.xpose.msra.mxu0 0.0
        %1146 = vmatprep.subr.mxu0 0.0
        %1147 = vmatpush1.xpose.msra.mxu0 0.0
        %1148 = vmatprep.subr.mxu0 0.0
        %1149 = vmatpush1.xpose.msra.mxu0 0.0
        %1150 = vmatprep.subr.mxu0 0.0
        %1151 = vmatpush1.xpose.msra.mxu0 0.0
        %1152 = vmatprep.mubr.f32.mxu0 0.0
        %1153 = vmatmul.mubr.f32.gmra.mrb[0].mxu0 %v1057
        %v1154 = vpop.f32.mrb[0].mxu0
        %v1155 = vadd.f32 0.0, %v1154
        %v1156 = vpop.f32.mrb[0].mxu0
        %1157 = vmatprep.mubr.f32.mxu0 0.0
        %1158 = vmatmul.mubr.f32.gmra.mrb[0].mxu0 %v1059
        %v1159 = vpop.f32.mrb[0].mxu0
        %v1160 = vadd.f32 0.0, %v1159
        %v1161 = vpop.f32.mrb[0].mxu0
        %1162 = vmatprep.mubr.f32.mxu0 0.0
        %1163 = vmatmul.mubr.f32.gmra.mrb[0].mxu0 %v1061
        %v1164 = vpop.f32.mrb[0].mxu0
        %v1165 = vadd.f32 0.0, %v1164
        %v1166 = vpop.f32.mrb[0].mxu0
        %1167 = vmatprep.mubr.f32.mxu0 0.0
        %1168 = vmatmul.mubr.f32.gmra.mrb[0].mxu0 %v1063
        %v1169 = vpop.f32.mrb[0].mxu0
        %v1170 = vadd.f32 0.0, %v1169
        %v1171 = vpop.f32.mrb[0].mxu0
        %1172 = vmatprep.mubr.f32.mxu0 0.0
        %1173 = vmatmul.mubr.f32.gmra.mrb[0].mxu0 %v1065
        %v1174 = vpop.f32.mrb[0].mxu0
        %v1175 = vadd.f32 0.0, %v1174
        %v1176 = vpop.f32.mrb[0].mxu0
        %1177 = vmatprep.mubr.f32.mxu0 0.0
        %1178 = vmatmul.mubr.f32.gmra.mrb[0].mxu0 %v1067
        %v1179 = vpop.f32.mrb[0].mxu0
        %v1180 = vadd.f32 0.0, %v1179
        %v1181 = vpop.f32.mrb[0].mxu0
        %1182 = vmatprep.mubr.f32.mxu0 0.0
        %1183 = vmatmul.mubr.f32.gmra.mrb[0].mxu0 %v1069
        %v1184 = vpop.f32.mrb[0].mxu0
        %v1185 = vadd.f32 0.0, %v1184
        %v1186 = vpop.f32.mrb[0].mxu0
        %1187 = vmatprep.mubr.f32.mxu0 0.0
        %1188 = vmatmul.mubr.f32.gmra.mrb[0].mxu0 %v1071
        %v1189 = vpop.f32.mrb[0].mxu0
        %v1190 = vadd.f32 0.0, %v1189
        %v1191 = vpop.f32.mrb[0].mxu0
        %1192 = vmatprep.mubr.f32.mxu0 0.0
        %1193 = vmatmul.mubr.f32.gmra.mrb[0].mxu0 %v1073
        %v1194 = vpop.f32.mrb[0].mxu0
        %v1195 = vadd.f32 0.0, %v1194
        %v1196 = vpop.f32.mrb[0].mxu0
        %1197 = vmatprep.mubr.f32.mxu0 0.0
        %1198 = vmatmul.mubr.f32.gmra.mrb[0].mxu0 %v1075
        %v1199 = vpop.f32.mrb[0].mxu0
        %v1200 = vadd.f32 0.0, %v1199
        %v1201 = vpop.f32.mrb[0].mxu0
        %1202 = vmatprep.mubr.f32.mxu0 0.0
        %1203 = vmatmul.mubr.f32.gmra.mrb[0].mxu0 %v1077
        %v1204 = vpop.f32.mrb[0].mxu0
        %v1205 = vadd.f32 0.0, %v1204
        %v1206 = vpop.f32.mrb[0].mxu0
        %1207 = vmatprep.mubr.f32.mxu0 0.0
        %1208 = vmatmul.mubr.f32.gmra.mrb[0].mxu0 %v1079
        %v1209 = vpop.f32.mrb[0].mxu0
        %v1210 = vadd.f32 0.0, %v1209
        %v1211 = vpop.f32.mrb[0].mxu0
        %1212 = vmatprep.mubr.f32.mxu0 0.0
        %1213 = vmatmul.mubr.f32.gmra.mrb[0].mxu0 %v1081
        %v1214 = vpop.f32.mrb[0].mxu0
        %v1215 = vadd.f32 0.0, %v1214
        %v1216 = vpop.f32.mrb[0].mxu0
        %1217 = vmatprep.mubr.f32.mxu0 0.0
        %1218 = vmatmul.mubr.f32.gmra.mrb[0].mxu0 %v1083
        %v1219 = vpop.f32.mrb[0].mxu0
        %v1220 = vadd.f32 0.0, %v1219
        %v1221 = vpop.f32.mrb[0].mxu0
        %1222 = vmatprep.mubr.f32.mxu0 0.0
        %1223 = vmatmul.mubr.f32.gmra.mrb[0].mxu0 %v1085
        %v1224 = vpop.f32.mrb[0].mxu0
        %v1225 = vadd.f32 0.0, %v1224
        %v1226 = vpop.f32.mrb[0].mxu0
        %1227 = vmatprep.mubr.f32.mxu0 0.0
        %1228 = vmatmul.mubr.f32.gmra.mrb[0].mxu0 %v1087
        %v1229 = vpop.f32.mrb[0].mxu0
        %v1230 = vadd.f32 0.0, %v1229
        %v1231 = vpop.f32.mrb[0].mxu0
        %1232 = vdwg.mxu0
        %v1233 = vld [vmem:[%s3] sm:$0xff]
        %v1234 = vld [vmem:[%s3 + $0x8] sm:$0xff]
        %v1235 = vld [vmem:[%s3 + $0x10] sm:$0xff]
        %v1236 = vld [vmem:[%s3 + $0x18] sm:$0xff]
        %v1237 = vld [vmem:[%s3 + $0x20] sm:$0xff]
        %v1238 = vld [vmem:[%s3 + $0x28] sm:$0xff]
        %v1239 = vld [vmem:[%s3 + $0x30] sm:$0xff]
        %v1240 = vld [vmem:[%s3 + $0x38] sm:$0xff]
        %v1241 = vld [vmem:[%s3 + $0x40] sm:$0xff]
        %v1242 = vld [vmem:[%s3 + $0x48] sm:$0xff]
        %v1243 = vld [vmem:[%s3 + $0x50] sm:$0xff]
        %v1244 = vld [vmem:[%s3 + $0x58] sm:$0xff]
        %v1245 = vld [vmem:[%s3 + $0x60] sm:$0xff]
        %v1246 = vld [vmem:[%s3 + $0x68] sm:$0xff]
        %v1247 = vld [vmem:[%s3 + $0x70] sm:$0xff]
        %v1248 = vld [vmem:[%s3 + $0x78] sm:$0xff]
        %v1249 = vmul.f32 %v1155, %v1233
        %v1250 = vmul.f32 %v1160, %v1234
        %v1251 = vmul.f32 %v1165, %v1235
        %v1252 = vmul.f32 %v1170, %v1236
        %v1253 = vmul.f32 %v1175, %v1237
        %v1254 = vmul.f32 %v1180, %v1238
        %v1255 = vmul.f32 %v1185, %v1239
        %v1256 = vmul.f32 %v1190, %v1240
        %v1257 = vmul.f32 %v1195, %v1241
        %v1258 = vmul.f32 %v1200, %v1242
        %v1259 = vmul.f32 %v1205, %v1243
        %v1260 = vmul.f32 %v1210, %v1244
        %v1261 = vmul.f32 %v1215, %v1245
        %v1262 = vmul.f32 %v1220, %v1246
        %v1263 = vmul.f32 %v1225, %v1247
        %v1264 = vmul.f32 %v1230, %v1248
        %v1265 = vld [vmem:[%s2] sm:$0xff]
        %v1266 = vld [vmem:[%s2 + $0x8] sm:$0xff]
        %1267 = vmatprep.subr.mxu0 0.0
        %1268 = vmatpush1.xpose.msra.mxu0 %v1249
        %1269 = vmatprep.subr.mxu0 0.0
        %1270 = vmatpush1.xpose.msra.mxu0 %v1250
        %1271 = vmatprep.subr.mxu0 0.0
        %1272 = vmatpush1.xpose.msra.mxu0 %v1251
        %1273 = vmatprep.subr.mxu0 0.0
        %1274 = vmatpush1.xpose.msra.mxu0 %v1252
        %1275 = vmatprep.subr.mxu0 0.0
        %1276 = vmatpush1.xpose.msra.mxu0 %v1253
        %1277 = vmatprep.subr.mxu0 0.0
        %1278 = vmatpush1.xpose.msra.mxu0 %v1254
        %1279 = vmatprep.subr.mxu0 0.0
        %1280 = vmatpush1.xpose.msra.mxu0 %v1255
        %1281 = vmatprep.subr.mxu0 0.0
        %1282 = vmatpush1.xpose.msra.mxu0 %v1256
        %1283 = vmatprep.subr.mxu0 0.0
        %1284 = vmatpush1.xpose.msra.mxu0 %v1257
        %1285 = vmatprep.subr.mxu0 0.0
        %1286 = vmatpush1.xpose.msra.mxu0 %v1258
        %1287 = vmatprep.subr.mxu0 0.0
        %1288 = vmatpush1.xpose.msra.mxu0 %v1259
        %1289 = vmatprep.subr.mxu0 0.0
        %1290 = vmatpush1.xpose.msra.mxu0 %v1260
        %1291 = vmatprep.subr.mxu0 0.0
        %1292 = vmatpush1.xpose.msra.mxu0 %v1261
        %1293 = vmatprep.subr.mxu0 0.0
        %1294 = vmatpush1.xpose.msra.mxu0 %v1262
        %1295 = vmatprep.subr.mxu0 0.0
        %1296 = vmatpush1.xpose.msra.mxu0 %v1263
        %1297 = vmatprep.subr.mxu0 0.0
        %1298 = vmatpush1.xpose.msra.mxu0 %v1264
        %1299 = vmatprep.subr.mxu0 0.0
        %1300 = vmatpush1.xpose.msra.mxu0 0.0
        %1301 = vmatprep.subr.mxu0 0.0
        %1302 = vmatpush1.xpose.msra.mxu0 0.0
        %1303 = vmatprep.subr.mxu0 0.0
        %1304 = vmatpush1.xpose.msra.mxu0 0.0
        %1305 = vmatprep.subr.mxu0 0.0
        %1306 = vmatpush1.xpose.msra.mxu0 0.0
        %1307 = vmatprep.subr.mxu0 0.0
        %1308 = vmatpush1.xpose.msra.mxu0 0.0
        %1309 = vmatprep.subr.mxu0 0.0
        %1310 = vmatpush1.xpose.msra.mxu0 0.0
        %1311 = vmatprep.subr.mxu0 0.0
        %1312 = vmatpush1.xpose.msra.mxu0 0.0
        %1313 = vmatprep.subr.mxu0 0.0
        %1314 = vmatpush1.xpose.msra.mxu0 0.0
        %1315 = vmatprep.subr.mxu0 0.0
        %1316 = vmatpush1.xpose.msra.mxu0 0.0
        %1317 = vmatprep.subr.mxu0 0.0
        %1318 = vmatpush1.xpose.msra.mxu0 0.0
        %1319 = vmatprep.subr.mxu0 0.0
        %1320 = vmatpush1.xpose.msra.mxu0 0.0
        %1321 = vmatprep.subr.mxu0 0.0
        %1322 = vmatpush1.xpose.msra.mxu0 0.0
        %1323 = vmatprep.subr.mxu0 0.0
        %1324 = vmatpush1.xpose.msra.mxu0 0.0
        %1325 = vmatprep.subr.mxu0 0.0
        %1326 = vmatpush1.xpose.msra.mxu0 0.0
        %1327 = vmatprep.subr.mxu0 0.0
        %1328 = vmatpush1.xpose.msra.mxu0 0.0
        %1329 = vmatprep.subr.mxu0 0.0
        %1330 = vmatpush1.xpose.msra.mxu0 0.0
        %1331 = vmatprep.mubr.f32.mxu0 0.0
        %1332 = vmatmul.mubr.f32.gmra.mrb[0].mxu0 %v1265
        %v1333 = vpop.f32.mrb[0].mxu0
        %v1334 = vadd.f32 0.0, %v1333
        %v1335 = vpop.f32.mrb[0].mxu0
        %1336 = vmatprep.mubr.f32.mxu0 0.0
        %1337 = vmatmul.mubr.f32.gmra.mrb[0].mxu0 %v1266
        %v1338 = vpop.f32.mrb[0].mxu0
        %v1339 = vadd.f32 0.0, %v1338
        %v1340 = vpop.f32.mrb[0].mxu0
        %1341 = vdwg.mxu0
        %1342 = vmatprep.subr.mxu0 0.0
        %1343 = vmatpush1.msra.mxu0 %v925
        %1344 = vmatprep.subr.mxu0 0.0
        %1345 = vmatpush1.msra.mxu0 %v926
        %1346 = vmatprep.subr.mxu0 0.0
        %1347 = vmatpush1.msra.mxu0 %v927
        %1348 = vmatprep.subr.mxu0 0.0
        %1349 = vmatpush1.msra.mxu0 %v928
        %1350 = vmatprep.subr.mxu0 0.0
        %1351 = vmatpush1.msra.mxu0 %v930
        %1352 = vmatprep.subr.mxu0 0.0
        %1353 = vmatpush1.msra.mxu0 %v931
        %1354 = vmatprep.subr.mxu0 0.0
        %1355 = vmatpush1.msra.mxu0 %v932
        %1356 = vmatprep.subr.mxu0 0.0
        %1357 = vmatpush1.msra.mxu0 %v933
        %1358 = vmatprep.subr.mxu0 0.0
        %1359 = vmatpush1.msra.mxu0 %v935
        %1360 = vmatprep.subr.mxu0 0.0
        %1361 = vmatpush1.msra.mxu0 %v936
        %1362 = vmatprep.subr.mxu0 0.0
        %1363 = vmatpush1.msra.mxu0 %v937
        %1364 = vmatprep.subr.mxu0 0.0
        %1365 = vmatpush1.msra.mxu0 %v938
        %1366 = vmatprep.subr.mxu0 0.0
        %1367 = vmatpush1.msra.mxu0 %v940
        %1368 = vmatprep.subr.mxu0 0.0
        %1369 = vmatpush1.msra.mxu0 %v941
        %1370 = vmatprep.subr.mxu0 0.0
        %1371 = vmatpush1.msra.mxu0 %v942
        %1372 = vmatprep.subr.mxu0 0.0
        %1373 = vmatpush1.msra.mxu0 %v943
        %1374 = vmatprep.subr.mxu0 0.0
        %1375 = vmatpush1.msra.mxu0 0.0
        %1376 = vmatprep.subr.mxu0 0.0
        %1377 = vmatpush1.msra.mxu0 0.0
        %1378 = vmatprep.subr.mxu0 0.0
        %1379 = vmatpush1.msra.mxu0 0.0
        %1380 = vmatprep.subr.mxu0 0.0
        %1381 = vmatpush1.msra.mxu0 0.0
        %1382 = vmatprep.subr.mxu0 0.0
        %1383 = vmatpush1.msra.mxu0 0.0
        %1384 = vmatprep.subr.mxu0 0.0
        %1385 = vmatpush1.msra.mxu0 0.0
        %1386 = vmatprep.subr.mxu0 0.0
        %1387 = vmatpush1.msra.mxu0 0.0
        %1388 = vmatprep.subr.mxu0 0.0
        %1389 = vmatpush1.msra.mxu0 0.0
        %1390 = vmatprep.subr.mxu0 0.0
        %1391 = vmatpush1.msra.mxu0 0.0
        %1392 = vmatprep.subr.mxu0 0.0
        %1393 = vmatpush1.msra.mxu0 0.0
        %1394 = vmatprep.subr.mxu0 0.0
        %1395 = vmatpush1.msra.mxu0 0.0
        %1396 = vmatprep.subr.mxu0 0.0
        %1397 = vmatpush1.msra.mxu0 0.0
        %1398 = vmatprep.subr.mxu0 0.0
        %1399 = vmatpush1.msra.mxu0 0.0
        %1400 = vmatprep.subr.mxu0 0.0
        %1401 = vmatpush1.msra.mxu0 0.0
        %1402 = vmatprep.subr.mxu0 0.0
        %1403 = vmatpush1.msra.mxu0 0.0
        %1404 = vmatprep.subr.mxu0 0.0
        %1405 = vmatpush1.msra.mxu0 0.0
        %1406 = vmatprep.mubr.f32.mxu0 0.0
        %1407 = vmatmul.mubr.f32.gmra.mrb[0].mxu0 %v1334
        %v1408 = vpop.f32.mrb[0].mxu0
        %v1409 = vadd.f32 0.0, %v1408
        %v1410 = vpop.f32.mrb[0].mxu0
        %1411 = vmatprep.mubr.f32.mxu0 0.0
        %1412 = vmatmul.mubr.f32.gmra.mrb[0].mxu0 %v1339
        %v1413 = vpop.f32.mrb[0].mxu0
        %v1414 = vadd.f32 0.0, %v1413
        %v1415 = vpop.f32.mrb[0].mxu0
        %1416 = vdwg.mxu0
        %v1417 = vld [vmem:[%s4] sm:$0xff]
        %v1418 = vld [vmem:[%s4 + $0x8] sm:$0xff]
        %v1419 = vld [vmem:[%s4 + $0x10] sm:$0xff]
        %v1420 = vld [vmem:[%s4 + $0x18] sm:$0xff]
        %v1421 = vld [vmem:[%s4 + $0x20] sm:$0xff]
        %v1422 = vld [vmem:[%s4 + $0x28] sm:$0xff]
        %v1423 = vld [vmem:[%s4 + $0x30] sm:$0xff]
        %v1424 = vld [vmem:[%s4 + $0x38] sm:$0xff]
        %v1425 = vld [vmem:[%s4 + $0x40] sm:$0xff]
        %v1426 = vld [vmem:[%s4 + $0x48] sm:$0xff]
        %v1427 = vld [vmem:[%s4 + $0x50] sm:$0xff]
        %v1428 = vld [vmem:[%s4 + $0x58] sm:$0xff]
        %v1429 = vld [vmem:[%s4 + $0x60] sm:$0xff]
        %v1430 = vld [vmem:[%s4 + $0x68] sm:$0xff]
        %v1431 = vld [vmem:[%s4 + $0x70] sm:$0xff]
        %v1432 = vld [vmem:[%s4 + $0x78] sm:$0xff]
        %1433 = vmatprep.subr.mxu0 0.0
        %1434 = vmatpush1.msra.mxu0 %v1417
        %1435 = vmatprep.subr.mxu0 0.0
        %1436 = vmatpush1.msra.mxu0 %v1418
        %1437 = vmatprep.subr.mxu0 0.0
        %1438 = vmatpush1.msra.mxu0 %v1419
        %1439 = vmatprep.subr.mxu0 0.0
        %1440 = vmatpush1.msra.mxu0 %v1420
        %1441 = vmatprep.subr.mxu0 0.0
        %1442 = vmatpush1.msra.mxu0 %v1421
        %1443 = vmatprep.subr.mxu0 0.0
        %1444 = vmatpush1.msra.mxu0 %v1422
        %1445 = vmatprep.subr.mxu0 0.0
        %1446 = vmatpush1.msra.mxu0 %v1423
        %1447 = vmatprep.subr.mxu0 0.0
        %1448 = vmatpush1.msra.mxu0 %v1424
        %1449 = vmatprep.subr.mxu0 0.0
        %1450 = vmatpush1.msra.mxu0 %v1425
        %1451 = vmatprep.subr.mxu0 0.0
        %1452 = vmatpush1.msra.mxu0 %v1426
        %1453 = vmatprep.subr.mxu0 0.0
        %1454 = vmatpush1.msra.mxu0 %v1427
        %1455 = vmatprep.subr.mxu0 0.0
        %1456 = vmatpush1.msra.mxu0 %v1428
        %1457 = vmatprep.subr.mxu0 0.0
        %1458 = vmatpush1.msra.mxu0 %v1429
        %1459 = vmatprep.subr.mxu0 0.0
        %1460 = vmatpush1.msra.mxu0 %v1430
        %1461 = vmatprep.subr.mxu0 0.0
        %1462 = vmatpush1.msra.mxu0 %v1431
        %1463 = vmatprep.subr.mxu0 0.0
        %1464 = vmatpush1.msra.mxu0 %v1432
        %1465 = vmatprep.subr.mxu0 0.0
        %1466 = vmatpush1.msra.mxu0 0.0
        %1467 = vmatprep.subr.mxu0 0.0
        %1468 = vmatpush1.msra.mxu0 0.0
        %1469 = vmatprep.subr.mxu0 0.0
        %1470 = vmatpush1.msra.mxu0 0.0
        %1471 = vmatprep.subr.mxu0 0.0
        %1472 = vmatpush1.msra.mxu0 0.0
        %1473 = vmatprep.subr.mxu0 0.0
        %1474 = vmatpush1.msra.mxu0 0.0
        %1475 = vmatprep.subr.mxu0 0.0
        %1476 = vmatpush1.msra.mxu0 0.0
        %1477 = vmatprep.subr.mxu0 0.0
        %1478 = vmatpush1.msra.mxu0 0.0
        %1479 = vmatprep.subr.mxu0 0.0
        %1480 = vmatpush1.msra.mxu0 0.0
        %1481 = vmatprep.subr.mxu0 0.0
        %1482 = vmatpush1.msra.mxu0 0.0
        %1483 = vmatprep.subr.mxu0 0.0
        %1484 = vmatpush1.msra.mxu0 0.0
        %1485 = vmatprep.subr.mxu0 0.0
        %1486 = vmatpush1.msra.mxu0 0.0
        %1487 = vmatprep.subr.mxu0 0.0
        %1488 = vmatpush1.msra.mxu0 0.0
        %1489 = vmatprep.subr.mxu0 0.0
        %1490 = vmatpush1.msra.mxu0 0.0
        %1491 = vmatprep.subr.mxu0 0.0
        %1492 = vmatpush1.msra.mxu0 0.0
        %1493 = vmatprep.subr.mxu0 0.0
        %1494 = vmatpush1.msra.mxu0 0.0
        %1495 = vmatprep.subr.mxu0 0.0
        %1496 = vmatpush1.msra.mxu0 0.0
        %1497 = vmatprep.mubr.f32.mxu0 0.0
        %1498 = vmatmul.mubr.f32.gmra.mrb[0].mxu0 %v1409
        %v1499 = vpop.f32.mrb[0].mxu0
        %v1500 = vadd.f32 0.0, %v1499
        %v1501 = vpop.f32.mrb[0].mxu0
        %1502 = vmatprep.mubr.f32.mxu0 0.0
        %1503 = vmatmul.mubr.f32.gmra.mrb[0].mxu0 %v1414
        %v1504 = vpop.f32.mrb[0].mxu0
        %v1505 = vadd.f32 0.0, %v1504
        %v1506 = vpop.f32.mrb[0].mxu0
        %1507 = vdwg.mxu0
        %v1508 = vld [vmem:[%s5] sm:$0xff]
        %vm1509 = vcmask 64512
        %v1511 = vsel %vm1509, %v1500, 0
        %v1514 = vsel %vm1509, %v1505, 0
        %1516 = vmatprep.subr.mxu0 0.0
        %1517 = vmatpush1.msra.mxu0 %v1508
        %1518 = vmatprep.subr.mxu0 0.0
        %1519 = vmatpush1.msra.mxu0 0.0
        %1520 = vmatprep.subr.mxu0 0.0
        %1521 = vmatpush1.msra.mxu0 0.0
        %1522 = vmatprep.subr.mxu0 0.0
        %1523 = vmatpush1.msra.mxu0 0.0
        %1524 = vmatprep.subr.mxu0 0.0
        %1525 = vmatpush1.msra.mxu0 0.0
        %1526 = vmatprep.subr.mxu0 0.0
        %1527 = vmatpush1.msra.mxu0 0.0
        %1528 = vmatprep.subr.mxu0 0.0
        %1529 = vmatpush1.msra.mxu0 0.0
        %1530 = vmatprep.subr.mxu0 0.0
        %1531 = vmatpush1.msra.mxu0 0.0
        %1532 = vmatprep.subr.mxu0 0.0
        %1533 = vmatpush1.msra.mxu0 0.0
        %1534 = vmatprep.subr.mxu0 0.0
        %1535 = vmatpush1.msra.mxu0 0.0
        %1536 = vmatprep.subr.mxu0 0.0
        %1537 = vmatpush1.msra.mxu0 0.0
        %1538 = vmatprep.subr.mxu0 0.0
        %1539 = vmatpush1.msra.mxu0 0.0
        %1540 = vmatprep.subr.mxu0 0.0
        %1541 = vmatpush1.msra.mxu0 0.0
        %1542 = vmatprep.subr.mxu0 0.0
        %1543 = vmatpush1.msra.mxu0 0.0
        %1544 = vmatprep.subr.mxu0 0.0
        %1545 = vmatpush1.msra.mxu0 0.0
        %1546 = vmatprep.subr.mxu0 0.0
        %1547 = vmatpush1.msra.mxu0 0.0
        %1548 = vmatprep.subr.mxu0 0.0
        %1549 = vmatpush1.msra.mxu0 0.0
        %1550 = vmatprep.subr.mxu0 0.0
        %1551 = vmatpush1.msra.mxu0 0.0
        %1552 = vmatprep.subr.mxu0 0.0
        %1553 = vmatpush1.msra.mxu0 0.0
        %1554 = vmatprep.subr.mxu0 0.0
        %1555 = vmatpush1.msra.mxu0 0.0
        %1556 = vmatprep.subr.mxu0 0.0
        %1557 = vmatpush1.msra.mxu0 0.0
        %1558 = vmatprep.subr.mxu0 0.0
        %1559 = vmatpush1.msra.mxu0 0.0
        %1560 = vmatprep.subr.mxu0 0.0
        %1561 = vmatpush1.msra.mxu0 0.0
        %1562 = vmatprep.subr.mxu0 0.0
        %1563 = vmatpush1.msra.mxu0 0.0
        %1564 = vmatprep.subr.mxu0 0.0
        %1565 = vmatpush1.msra.mxu0 0.0
        %1566 = vmatprep.subr.mxu0 0.0
        %1567 = vmatpush1.msra.mxu0 0.0
        %1568 = vmatprep.subr.mxu0 0.0
        %1569 = vmatpush1.msra.mxu0 0.0
        %1570 = vmatprep.subr.mxu0 0.0
        %1571 = vmatpush1.msra.mxu0 0.0
        %1572 = vmatprep.subr.mxu0 0.0
        %1573 = vmatpush1.msra.mxu0 0.0
        %1574 = vmatprep.subr.mxu0 0.0
        %1575 = vmatpush1.msra.mxu0 0.0
        %1576 = vmatprep.subr.mxu0 0.0
        %1577 = vmatpush1.msra.mxu0 0.0
        %1578 = vmatprep.subr.mxu0 0.0
        %1579 = vmatpush1.msra.mxu0 0.0
        %1580 = vmatprep.mubr.f32.mxu0 0.0
        %1581 = vmatmul.mubr.f32.gmra.mrb[0].mxu0 %v1511
        %v1582 = vpop.f32.mrb[0].mxu0
        %v1583 = vadd.f32 0.0, %v1582
        %v1584 = vpop.f32.mrb[0].mxu0
        %1585 = vmatprep.mubr.f32.mxu0 0.0
        %1586 = vmatmul.mubr.f32.gmra.mrb[0].mxu0 %v1514
        %v1587 = vpop.f32.mrb[0].mxu0
        %v1588 = vadd.f32 0.0, %v1587
        %v1589 = vpop.f32.mrb[0].mxu0
        %1590 = vdwg.mxu0
        %v1591 = vsub.f32 %v1409, %v1583
        %v1592 = vsub.f32 %v1414, %v1588
        %v1593 = vmul.f32 %v1591, %v1591
        %v1594 = vmul.f32 %v1592, %v1592
        %1595 = vmatprep.subr.mxu0 0.0
        %1596 = vmatpush1.msra.mxu0 %v1417
        %1597 = vmatprep.subr.mxu0 0.0
        %1598 = vmatpush1.msra.mxu0 %v1418
        %1599 = vmatprep.subr.mxu0 0.0
        %1600 = vmatpush1.msra.mxu0 %v1419
        %1601 = vmatprep.subr.mxu0 0.0
        %1602 = vmatpush1.msra.mxu0 %v1420
        %1603 = vmatprep.subr.mxu0 0.0
        %1604 = vmatpush1.msra.mxu0 %v1421
        %1605 = vmatprep.subr.mxu0 0.0
        %1606 = vmatpush1.msra.mxu0 %v1422
        %1607 = vmatprep.subr.mxu0 0.0
        %1608 = vmatpush1.msra.mxu0 %v1423
        %1609 = vmatprep.subr.mxu0 0.0
        %1610 = vmatpush1.msra.mxu0 %v1424
        %1611 = vmatprep.subr.mxu0 0.0
        %1612 = vmatpush1.msra.mxu0 %v1425
        %1613 = vmatprep.subr.mxu0 0.0
        %1614 = vmatpush1.msra.mxu0 %v1426
        %1615 = vmatprep.subr.mxu0 0.0
        %1616 = vmatpush1.msra.mxu0 %v1427
        %1617 = vmatprep.subr.mxu0 0.0
        %1618 = vmatpush1.msra.mxu0 %v1428
        %1619 = vmatprep.subr.mxu0 0.0
        %1620 = vmatpush1.msra.mxu0 %v1429
        %1621 = vmatprep.subr.mxu0 0.0
        %1622 = vmatpush1.msra.mxu0 %v1430
        %1623 = vmatprep.subr.mxu0 0.0
        %1624 = vmatpush1.msra.mxu0 %v1431
        %1625 = vmatprep.subr.mxu0 0.0
        %1626 = vmatpush1.msra.mxu0 %v1432
        %1627 = vmatprep.subr.mxu0 0.0
        %1628 = vmatpush1.msra.mxu0 0.0
        %1629 = vmatprep.subr.mxu0 0.0
        %1630 = vmatpush1.msra.mxu0 0.0
        %1631 = vmatprep.subr.mxu0 0.0
        %1632 = vmatpush1.msra.mxu0 0.0
        %1633 = vmatprep.subr.mxu0 0.0
        %1634 = vmatpush1.msra.mxu0 0.0
        %1635 = vmatprep.subr.mxu0 0.0
        %1636 = vmatpush1.msra.mxu0 0.0
        %1637 = vmatprep.subr.mxu0 0.0
        %1638 = vmatpush1.msra.mxu0 0.0
        %1639 = vmatprep.subr.mxu0 0.0
        %1640 = vmatpush1.msra.mxu0 0.0
        %1641 = vmatprep.subr.mxu0 0.0
        %1642 = vmatpush1.msra.mxu0 0.0
        %1643 = vmatprep.subr.mxu0 0.0
        %1644 = vmatpush1.msra.mxu0 0.0
        %1645 = vmatprep.subr.mxu0 0.0
        %1646 = vmatpush1.msra.mxu0 0.0
        %1647 = vmatprep.subr.mxu0 0.0
        %1648 = vmatpush1.msra.mxu0 0.0
        %1649 = vmatprep.subr.mxu0 0.0
        %1650 = vmatpush1.msra.mxu0 0.0
        %1651 = vmatprep.subr.mxu0 0.0
        %1652 = vmatpush1.msra.mxu0 0.0
        %1653 = vmatprep.subr.mxu0 0.0
        %1654 = vmatpush1.msra.mxu0 0.0
        %1655 = vmatprep.subr.mxu0 0.0
        %1656 = vmatpush1.msra.mxu0 0.0
        %1657 = vmatprep.subr.mxu0 0.0
        %1658 = vmatpush1.msra.mxu0 0.0
        %1659 = vmatprep.mubr.f32.mxu0 0.0
        %1660 = vmatmul.mubr.f32.gmra.mrb[0].mxu0 %v1593
        %v1661 = vpop.f32.mrb[0].mxu0
        %v1662 = vadd.f32 0.0, %v1661
        %v1663 = vpop.f32.mrb[0].mxu0
        %1664 = vmatprep.mubr.f32.mxu0 0.0
        %1665 = vmatmul.mubr.f32.gmra.mrb[0].mxu0 %v1594
        %v1666 = vpop.f32.mrb[0].mxu0
        %v1667 = vadd.f32 0.0, %v1666
        %v1668 = vpop.f32.mrb[0].mxu0
        %1669 = vdwg.mxu0
        %v1671 = vsel %vm1509, %v1662, 0
        %v1674 = vsel %vm1509, %v1667, 0
        %1676 = vmatprep.subr.mxu0 0.0
        %1677 = vmatpush1.msra.mxu0 %v1508
        %1678 = vmatprep.subr.mxu0 0.0
        %1679 = vmatpush1.msra.mxu0 0.0
        %1680 = vmatprep.subr.mxu0 0.0
        %1681 = vmatpush1.msra.mxu0 0.0
        %1682 = vmatprep.subr.mxu0 0.0
        %1683 = vmatpush1.msra.mxu0 0.0
        %1684 = vmatprep.subr.mxu0 0.0
        %1685 = vmatpush1.msra.mxu0 0.0
        %1686 = vmatprep.subr.mxu0 0.0
        %1687 = vmatpush1.msra.mxu0 0.0
        %1688 = vmatprep.subr.mxu0 0.0
        %1689 = vmatpush1.msra.mxu0 0.0
        %1690 = vmatprep.subr.mxu0 0.0
        %1691 = vmatpush1.msra.mxu0 0.0
        %1692 = vmatprep.subr.mxu0 0.0
        %1693 = vmatpush1.msra.mxu0 0.0
        %1694 = vmatprep.subr.mxu0 0.0
        %1695 = vmatpush1.msra.mxu0 0.0
        %1696 = vmatprep.subr.mxu0 0.0
        %1697 = vmatpush1.msra.mxu0 0.0
        %1698 = vmatprep.subr.mxu0 0.0
        %1699 = vmatpush1.msra.mxu0 0.0
        %1700 = vmatprep.subr.mxu0 0.0
        %1701 = vmatpush1.msra.mxu0 0.0
        %1702 = vmatprep.subr.mxu0 0.0
        %1703 = vmatpush1.msra.mxu0 0.0
        %1704 = vmatprep.subr.mxu0 0.0
        %1705 = vmatpush1.msra.mxu0 0.0
        %1706 = vmatprep.subr.mxu0 0.0
        %1707 = vmatpush1.msra.mxu0 0.0
        %1708 = vmatprep.subr.mxu0 0.0
        %1709 = vmatpush1.msra.mxu0 0.0
        %1710 = vmatprep.subr.mxu0 0.0
        %1711 = vmatpush1.msra.mxu0 0.0
        %1712 = vmatprep.subr.mxu0 0.0
        %1713 = vmatpush1.msra.mxu0 0.0
        %1714 = vmatprep.subr.mxu0 0.0
        %1715 = vmatpush1.msra.mxu0 0.0
        %1716 = vmatprep.subr.mxu0 0.0
        %1717 = vmatpush1.msra.mxu0 0.0
        %1718 = vmatprep.subr.mxu0 0.0
        %1719 = vmatpush1.msra.mxu0 0.0
        %1720 = vmatprep.subr.mxu0 0.0
        %1721 = vmatpush1.msra.mxu0 0.0
        %1722 = vmatprep.subr.mxu0 0.0
        %1723 = vmatpush1.msra.mxu0 0.0
        %1724 = vmatprep.subr.mxu0 0.0
        %1725 = vmatpush1.msra.mxu0 0.0
        %1726 = vmatprep.subr.mxu0 0.0
        %1727 = vmatpush1.msra.mxu0 0.0
        %1728 = vmatprep.subr.mxu0 0.0
        %1729 = vmatpush1.msra.mxu0 0.0
        %1730 = vmatprep.subr.mxu0 0.0
        %1731 = vmatpush1.msra.mxu0 0.0
        %1732 = vmatprep.subr.mxu0 0.0
        %1733 = vmatpush1.msra.mxu0 0.0
        %1734 = vmatprep.subr.mxu0 0.0
        %1735 = vmatpush1.msra.mxu0 0.0
        %1736 = vmatprep.subr.mxu0 0.0
        %1737 = vmatpush1.msra.mxu0 0.0
        %1738 = vmatprep.subr.mxu0 0.0
        %1739 = vmatpush1.msra.mxu0 0.0
        %1740 = vmatprep.mubr.f32.mxu0 0.0
        %1741 = vmatmul.mubr.f32.gmra.mrb[0].mxu0 %v1671
        %v1742 = vpop.f32.mrb[0].mxu0
        %v1743 = vadd.f32 1e-05, %v1742
        %v1744 = vpop.f32.mrb[0].mxu0
        %1745 = vmatprep.mubr.f32.mxu0 0.0
        %1746 = vmatmul.mubr.f32.gmra.mrb[0].mxu0 %v1674
        %v1747 = vpop.f32.mrb[0].mxu0
        %v1748 = vadd.f32 1e-05, %v1747
        %v1749 = vpop.f32.mrb[0].mxu0
        %1750 = vdwg.mxu0
        %v1751 = vrsqrt.pop %v1743
        %v1752 = vrsqrt.pop %v1748
        %v1753 = vmul.f32 %v1591, %v1751
        %v1754 = vmul.f32 %v1592, %v1752
        %v1755 = vld [vmem:[%s6] sm:$0x1]
        %v1757 = vlaneseq
        %v1758 = vshrl.u32 %v1757, 7
        %v1759 = vsub.s32 0, %v1758
        %v1760 = vrot.slane %v1755, %v1759
        %v1762 = vmul.f32 %v1753, %v1760
        %v1763 = vmul.f32 %v1754, %v1760
        %v1764 = vld [vmem:[%s7] sm:$0x1]
        %v1766 = vlaneseq
        %v1767 = vshrl.u32 %v1766, 7
        %v1768 = vsub.s32 0, %v1767
        %v1769 = vrot.slane %v1764, %v1768
        %v1771 = vadd.f32 %v1762, %v1769
        %v1772 = vadd.f32 %v1763, %v1769
        %1773 = vst [vmem:[%s298] sm:$0xff] %v1771
        %1774 = vst [vmem:[%s298 + $0x8] sm:$0xff] %v1772
        %s1775 = sand.u32 %s203, 1
        %s1776 = scalar_lea.sflag [#allocation3], %s1775
        %s1777 = sand.u32 %s203, 1
        %s1778 = smul.addr %s1777, 16
        %s1779 = scalar_lea.vmem [#allocation2], %s1778
        // Predicated region
        $region53: #{tpu_custom_call.1} parent=51 // pred_check
          %p1780 = pneg %p213
        $region54: #{tpu_custom_call.1} parent=51 // pred_check_branch
          %1782 = sbr.rel (%p1780) target = $region56
        $region55: #{tpu_custom_call.1} parent=51 // pred_region
          %s1784 = ssub.s32 256, 256
          %1785 = vsyncadd %s1776, %s1784
          %s1786 = smul.addr %s22, 2
          %s1787 = smul.addr %s1786, 128
          %s1788 = scalar_lea.hbm %s8, %s1787
          %s1789 = sshll.u32 %s1779, 4
          %s1790 = int_to_ptr.vmem [resolvable:$true] %s1789
          %1795 = dma.vmem_to_hbm [thread:$0]  %s1790, 256, %s1788, %s1776, 128, 128, 8
        $region56: #{tpu_custom_call.1} parent=51 // pred_fallthru
          _
      $region52: #{tpu_custom_call.1} parent=5 // pred_fallthru
        _
      %p1796 = scmp.le.s32.totalorder 2, %s17
      // Predicated region
      $region57: #{tpu_custom_call.1} parent=5 // pred_check
        %p1797 = pneg %p1796
      $region58: #{tpu_custom_call.1} parent=5 // pred_check_branch
        %1799 = sbr.rel (%p1797) target = $region60
      $region59: #{tpu_custom_call.1} parent=5 // pred_region
        %s1800 = ssub.s32 %s17, 2
        // Predicated region
        $region61: #{tpu_custom_call.1} parent=59 // pred_check
          %p1801 = pneg %p219
        $region62: #{tpu_custom_call.1} parent=59 // pred_check_branch
          %1803 = sbr.rel (%p1801) target = $region64
        $region63: #{tpu_custom_call.1} parent=59 // pred_region
          %s1804 = sand.u32 %s204, 1
          %s1805 = scalar_lea.sflag [#allocation3], %s1804
          %s1806 = sand.u32 %s204, 1
          %s1807 = smul.addr %s1806, 16
          %s1808 = scalar_lea.vmem [#allocation2], %s1807
          %1809 = dma.done %s1805, 256
        $region64: #{tpu_custom_call.1} parent=59 // pred_fallthru
          _
      $region60: #{tpu_custom_call.1} parent=5 // pred_fallthru
        _
    $region6: #{tpu_custom_call.1} parent=1 // loop_footer
      %s21 = sadd.s32 1, %s17
    $region7: #{tpu_custom_call.1} parent=1 // loop_footer_branch
      %16 = sbr.rel target = $region3
    $region8: #{tpu_custom_call.1} parent=1 // loop_exit
      _
    %1810 = vsyncpa [#allocation3], 1
    %s1811 = scalar_lea.sflag [#allocation3], 1
    %1812 = vsyncpa %s1811, 1

</llo_original>
